<compile_context>
chip_gen: v7x
topology: tpu7x:2x2x1
jax: 0.10.0
libtpu: 0.0.40
codegen_flags: <defaults>
</compile_context>

<pallas_src>
import jax
import jax.numpy as jnp
import numpy as np
from jax import lax
from jax.experimental import pallas as pl
from jax.experimental.pallas import tpu as pltpu


# ---------------------------------------------------------------------------
# Helpers
# ---------------------------------------------------------------------------
def _nt_dot(a, b):
    """[1, K] x [N, K] -> [1, N]  (contract last dims; lane-dense output)."""
    a = a.astype(jnp.float32)
    b = b.astype(jnp.float32)
    return lax.dot_general(a, b, (((1,), (1,)), ((), ())),
                           preferred_element_type=jnp.float32)


def _vmem_limit_bytes(bb, n, f, h):
    """Per-grid-step VMEM footprint (double-buffered) + slack, clamped."""
    bf2, f4 = 2, 4
    per_step_in = bb * n * f * bf2 * 2 + bb * n * n * bf2 + bb * n * f4
    per_step_out = bb * n * h * f4 + 3 * bb * 2 * n * f4
    weights = (f * 2 * h + h * h + h * f) * bf2 + h * f4 + 4 * f4
    need = 2 * (per_step_in + per_step_out + weights) + (4 << 20)
    return int(min(max(need, 32 << 20), 64 << 20))


# ---------------------------------------------------------------------------
# Pallas kernel
# ---------------------------------------------------------------------------
def dgi_pre_kernel(scal_ref,                      # SMEM f32[4]: alpha, b_e, b_i, b_c
                   seq1_ref, seq2_ref,            # [BB, N, F] bf16
                   adj_ref,                       # [BB, N, N] bf16
                   mskw_ref,                      # [BB, 1, N] f32  (msk / sum(msk))
                   wgi_ref,                       # [F, 2H] bf16  (= concat(W_g, W_i))
                   bg_ref,                        # [1, H] f32
                   wet_ref,                       # [H, H] bf16   (= W_e^T)
                   wct_ref,                       # [H, F] bf16   (= W_c^T)
                   h1_ref,                        # out [BB, N, H] f32
                   nodes_ref, locs_ref, cs_ref):  # out [BB, 2, N] f32 each
    alpha = scal_ref[0]
    b_e = scal_ref[1]
    b_i = scal_ref[2]
    b_c = scal_ref[3]

    bb = seq1_ref.shape[0]
    h_dim = bg_ref.shape[1]

    wgi = wgi_ref[...]                            # [F, 2H] bf16
    bg = bg_ref[...]                              # [1, H]  f32
    wet = wet_ref[...]                            # [H, H]  bf16
    wct = wct_ref[...]                            # [H, F]  bf16
    ones_row = jnp.ones((1, h_dim), jnp.float32)  # reduction vector for locs

    for g in range(bb):                           # static unrolled graph loop
        seq1 = seq1_ref[g]                        # [N, F] bf16
        seq2 = seq2_ref[g]
        adj = adj_ref[g]                          # [N, N] bf16
        mskw = mskw_ref[g]                        # [1, N] f32

        # ---- fused seq-side matmul: one MXU pass = seq@W_g | seq@W_i -------
        t1 = jnp.dot(seq1, wgi, preferred_element_type=jnp.float32)   # [N, 2H]
        t2 = jnp.dot(seq2, wgi, preferred_element_type=jnp.float32)
        tg1, ti1 = t1[:, :h_dim], t1[:, h_dim:]
        tg2, ti2 = t2[:, :h_dim], t2[:, h_dim:]

        # ---- GCN: PReLU( adj @ (seq @ W_g) + b_g ) --------------------------
        def prelu(o):
            return jnp.where(o > 0.0, o, alpha * o)

        h1 = prelu(jnp.dot(adj, tg1, preferred_element_type=jnp.float32) + bg)
        h2 = prelu(jnp.dot(adj, tg2, preferred_element_type=jnp.float32) + bg)
        h1_ref[g] = h1

        # ---- AvgReadout (pre-normalised mask weights) + sigmoid -------------
        c = jax.nn.sigmoid(
            jnp.dot(mskw, h1, preferred_element_type=jnp.float32))    # [1, H]

        # ---- InterDiscriminator: lane-dense [1, N] score rows ---------------
        tmp_e = jnp.dot(c, wet, preferred_element_type=jnp.float32)   # [1, H]
        u = jnp.dot(c, wct, preferred_element_type=jnp.float32)       # [1, F]

        # nodes:  h_n^T W_e c   ==  (c W_e^T) . h_n
        nodes_ref[g, 0:1, :] = _nt_dot(tmp_e, h1) + b_e
        nodes_ref[g, 1:2, :] = _nt_dot(tmp_e, h2) + b_e

        # locs:   seq_n^T W_i h1_n  ==  sum_h (seq W_i)[n,h] * h1[n,h]
        locs_ref[g, 0:1, :] = _nt_dot(ones_row, ti1 * h1) + b_i
        locs_ref[g, 1:2, :] = _nt_dot(ones_row, ti2 * h1) + b_i

        # cs:     seq_n^T W_c c  ==  (c W_c^T) . seq_n
        cs_ref[g, 0:1, :] = _nt_dot(u, seq1) + b_c
        cs_ref[g, 1:2, :] = _nt_dot(u, seq2) + b_c


# ---------------------------------------------------------------------------
# Wrapper
# ---------------------------------------------------------------------------
def dgi_pre_forward(seq1, seq2, adj, msk, params, *, graphs_per_block=None):
    B, N, F = seq1.shape
    H = params["wg"].shape[1]
    f32, bf16 = jnp.float32, jnp.bfloat16

    if graphs_per_block is None:
        graphs_per_block = 2 if B % 2 == 0 else 1
    bb = graphs_per_block
    assert B % bb == 0, "graphs_per_block must divide the batch"

    # Glue (layout/dtype only):
    #  - mask weights normalised by the whole-tensor sum (canonical AvgReadout;
    #    switch to per-graph by using jnp.sum(msk, -1, keepdims=True)).
    mskw = (msk / jnp.sum(msk)).astype(f32).reshape(B, 1, N)           # [B,1,N]
    wgi = jnp.concatenate([params["wg"], params["wi"]], axis=1).astype(bf16)
    scalars = jnp.array(
        [params["alpha"], params["b_e"], params["b_i"], params["b_c"]], dtype=f32)

    grid = (B // bb,)
    rep = lambda i: (0, 0)

    in_specs = [
        pl.BlockSpec(memory_space=pltpu.MemorySpace.SMEM),             # scalars
        pl.BlockSpec((bb, N, F), lambda i: (i, 0, 0)),                 # seq1 (bf16)
        pl.BlockSpec((bb, N, F), lambda i: (i, 0, 0)),                 # seq2 (bf16)
        pl.BlockSpec((bb, N, N), lambda i: (i, 0, 0)),                 # adj  (bf16)
        pl.BlockSpec((bb, 1, N), lambda i: (i, 0, 0)),                 # mskw (f32)
        pl.BlockSpec((F, 2 * H), rep),                                 # W_g | W_i
        pl.BlockSpec((1, H), rep),                                     # b_g
        pl.BlockSpec((H, H), rep),                                     # W_e^T
        pl.BlockSpec((H, F), rep),                                     # W_c^T
    ]
    out_specs = [
        pl.BlockSpec((bb, N, H), lambda i: (i, 0, 0)),                 # h_1
        pl.BlockSpec((bb, 2, N), lambda i: (i, 0, 0)),                 # nodes
        pl.BlockSpec((bb, 2, N), lambda i: (i, 0, 0)),                 # locs
        pl.BlockSpec((bb, 2, N), lambda i: (i, 0, 0)),                 # cs
    ]
    out_shape = [
        jax.ShapeDtypeStruct((B, N, H), f32),
        jax.ShapeDtypeStruct((B, 2, N), f32),
        jax.ShapeDtypeStruct((B, 2, N), f32),
        jax.ShapeDtypeStruct((B, 2, N), f32),
    ]

    h1, nodes, locs, cs = pl.pallas_call(
        dgi_pre_kernel,
        grid=grid,
        in_specs=in_specs,
        out_specs=out_specs,
        out_shape=out_shape,
        compiler_params=pltpu.CompilerParams(
            dimension_semantics=("parallel",),
            vmem_limit_bytes=_vmem_limit_bytes(bb, N, F, H)),
    )(scalars,
      seq1.astype(bf16), seq2.astype(bf16), adj.astype(bf16), mskw,
      wgi, params["bg"].reshape(1, H).astype(f32),
      params["we"].T.astype(bf16), params["wc"].T.astype(bf16))

    # Glue: [B, 2, N] row-major reshape == torch.cat((sc1, sc2), dim=1).
    return (nodes.reshape(B, 2 * N), locs.reshape(B, 2 * N),
            cs.reshape(B, 2 * N), h1)


# ---------------------------------------------------------------------------
# Pure-JAX reference (mirrors the PyTorch semantics documented above, f32)
# ---------------------------------------------------------------------------
def dgi_pre_reference(seq1, seq2, adj, msk, params):
    alpha = params["alpha"]

    def gcn(s):
        t = jnp.einsum("bnf,fh->bnh", s, params["wg"])
        o = jnp.einsum("bnm,bmh->bnh", adj, t) + params["bg"]
        return jnp.where(o > 0.0, o, alpha * o)

    h1 = gcn(seq1)
    h2 = gcn(seq2)
    c = jnp.sum(h1 * msk[..., None], axis=1) / jnp.sum(msk)
    c = jax.nn.sigmoid(c)                                             # [B, H]

    def bilinear_vs_c(x, w, b):   # x: [B,N,D], w: [D,H], c: [B,H]
        return jnp.einsum("bnd,dh,bh->bn", x, w, c) + b

    sc1 = bilinear_vs_c(h1, params["we"], params["b_e"])
    sc2 = bilinear_vs_c(h2, params["we"], params["b_e"])
    logits_nodes = jnp.concatenate([sc1, sc2], axis=1)

    sc1 = jnp.einsum("bnf,fh,bnh->bn", seq1, params["wi"], h1) + params["b_i"]
    sc2 = jnp.einsum("bnf,fh,bnh->bn", seq2, params["wi"], h1) + params["b_i"]
    logits_locs = jnp.concatenate([sc1, sc2], axis=1)

    sc1 = bilinear_vs_c(seq1, params["wc"], params["b_c"])
    sc2 = bilinear_vs_c(seq2, params["wc"], params["b_c"])
    logits_cs = jnp.concatenate([sc1, sc2], axis=1)
    return logits_nodes, logits_locs, logits_cs, h1


# ---------------------------------------------------------------------------
if __name__ == "__main__":
    B, N, F, H = 2, 16, 32, 32   # batch, nodes, n_in, n_h
    key = jax.random.PRNGKey(0)
    k = jax.random.split(key, 8)

    seq1 = jax.random.normal(k[0], (B, N, F), dtype=jnp.float32)
    seq2 = jax.random.normal(k[1], (B, N, F), dtype=jnp.float32)

    # Dense, row-normalized adjacency with self-loops (deterministic).
    a = (jax.random.uniform(k[2], (B, N, N)) < 0.3).astype(jnp.float32)
    a = a + jnp.transpose(a, (0, 2, 1)) + jnp.eye(N)[None]
    a = (a > 0).astype(jnp.float32)
    adj = a / jnp.sum(a, axis=-1, keepdims=True)

    msk = jnp.ones((B, N), dtype=jnp.float32)

    params = {
        "wg": 0.1 * jax.random.normal(k[3], (F, H), dtype=jnp.float32),
        "bg": jnp.zeros((H,), dtype=jnp.float32),
        "we": 0.1 * jax.random.normal(k[4], (H, H), dtype=jnp.float32),
        "wi": 0.1 * jax.random.normal(k[5], (F, H), dtype=jnp.float32),
        "wc": 0.1 * jax.random.normal(k[6], (F, H), dtype=jnp.float32),
        "alpha": 0.25,   # PReLU default init
        "b_e": 0.01, "b_i": -0.02, "b_c": 0.03,
    }

    outs = dgi_pre_forward(seq1, seq2, adj, msk, params)
    outs = jax.block_until_ready(outs)

    refs = dgi_pre_reference(seq1, seq2, adj, msk, params)
    # Tolerance accounts for bf16 streaming of seq/adj/weights (f32 accumulate).
    for o, r, name in zip(outs, refs, ["nodes", "locs", "cs", "h1"]):
        np.testing.assert_allclose(np.asarray(o), np.asarray(r),
                                   rtol=3e-2, atol=3e-2, err_msg=name)

    print("KERNEL_OK")
</pallas_src>

<mosaic_0001>
module attributes {stable_mosaic.version = 11 : i64} {
  func.func @dgi_pre_kernel(%arg0: i32, %arg1: memref<4xf32, #tpu.memory_space<smem>>, %arg2: memref<2x16x32xbf16, #tpu.memory_space<vmem>>, %arg3: memref<2x16x32xbf16, #tpu.memory_space<vmem>>, %arg4: memref<2x16x16xbf16, #tpu.memory_space<vmem>>, %arg5: memref<2x1x16xf32, #tpu.memory_space<vmem>>, %arg6: memref<32x64xbf16, #tpu.memory_space<vmem>>, %arg7: memref<1x32xf32, #tpu.memory_space<vmem>>, %arg8: memref<32x32xbf16, #tpu.memory_space<vmem>>, %arg9: memref<32x32xbf16, #tpu.memory_space<vmem>>, %arg10: memref<2x16x32xf32, #tpu.memory_space<vmem>>, %arg11: memref<2x2x16xf32, #tpu.memory_space<vmem>>, %arg12: memref<2x2x16xf32, #tpu.memory_space<vmem>>, %arg13: memref<2x2x16xf32, #tpu.memory_space<vmem>>) attributes {dimension_semantics = [#tpu.dimension_semantics<parallel>], iteration_bounds = array<i64: 1>, scalar_prefetch = 0 : i64, scratch_operands = 0 : i64, tpu.core_type = #tpu.core_type<tc>, window_params = [{transform_indices = @transform_0, window_bounds = array<i64: 4>}, {transform_indices = @transform_1, window_bounds = array<i64: 2, 16, 32>}, {transform_indices = @transform_2, window_bounds = array<i64: 2, 16, 32>}, {transform_indices = @transform_3, window_bounds = array<i64: 2, 16, 16>}, {transform_indices = @transform_4, window_bounds = array<i64: 2, 1, 16>}, {pipeline_mode = #tpu.pipeline_mode<synchronous>, transform_indices = @transform_5, window_bounds = array<i64: 32, 64>}, {pipeline_mode = #tpu.pipeline_mode<synchronous>, transform_indices = @transform_6, window_bounds = array<i64: 1, 32>}, {pipeline_mode = #tpu.pipeline_mode<synchronous>, transform_indices = @transform_7, window_bounds = array<i64: 32, 32>}, {pipeline_mode = #tpu.pipeline_mode<synchronous>, transform_indices = @transform_8, window_bounds = array<i64: 32, 32>}, {transform_indices = @transform_9, window_bounds = array<i64: 2, 16, 32>}, {transform_indices = @transform_10, window_bounds = array<i64: 2, 2, 16>}, {transform_indices = @transform_11, window_bounds = array<i64: 2, 2, 16>}, {transform_indices = @transform_12, window_bounds = array<i64: 2, 2, 16>}]} {
    %c0 = arith.constant 0 : index
    %0 = memref.load %arg1[%c0] : memref<4xf32, #tpu.memory_space<smem>>
    %c1 = arith.constant 1 : index
    %1 = memref.load %arg1[%c1] : memref<4xf32, #tpu.memory_space<smem>>
    %c2 = arith.constant 2 : index
    %2 = memref.load %arg1[%c2] : memref<4xf32, #tpu.memory_space<smem>>
    %c3 = arith.constant 3 : index
    %3 = memref.load %arg1[%c3] : memref<4xf32, #tpu.memory_space<smem>>
    %c0_0 = arith.constant 0 : index
    %c0_1 = arith.constant 0 : index
    %4 = vector.load %arg6[%c0_0, %c0_1] : memref<32x64xbf16, #tpu.memory_space<vmem>>, vector<32x64xbf16>
    %c0_2 = arith.constant 0 : index
    %c0_3 = arith.constant 0 : index
    %5 = vector.load %arg7[%c0_2, %c0_3] : memref<1x32xf32, #tpu.memory_space<vmem>>, vector<1x32xf32>
    %c0_4 = arith.constant 0 : index
    %c0_5 = arith.constant 0 : index
    %6 = vector.load %arg8[%c0_4, %c0_5] : memref<32x32xbf16, #tpu.memory_space<vmem>>, vector<32x32xbf16>
    %c0_6 = arith.constant 0 : index
    %c0_7 = arith.constant 0 : index
    %7 = vector.load %arg9[%c0_6, %c0_7] : memref<32x32xbf16, #tpu.memory_space<vmem>>, vector<32x32xbf16>
    %cst = arith.constant 1.000000e+00 : f32
    %8 = vector.broadcast %cst : f32 to vector<1x32xf32>
    %c0_8 = arith.constant 0 : index
    %c0_9 = arith.constant 0 : index
    %c0_10 = arith.constant 0 : index
    %9 = vector.load %arg2[%c0_8, %c0_9, %c0_10] : memref<2x16x32xbf16, #tpu.memory_space<vmem>>, vector<1x16x32xbf16>
    %10 = vector.shape_cast %9 : vector<1x16x32xbf16> to vector<16x32xbf16>
    %c0_11 = arith.constant 0 : index
    %c0_12 = arith.constant 0 : index
    %c0_13 = arith.constant 0 : index
    %11 = vector.load %arg3[%c0_11, %c0_12, %c0_13] : memref<2x16x32xbf16, #tpu.memory_space<vmem>>, vector<1x16x32xbf16>
    %12 = vector.shape_cast %11 : vector<1x16x32xbf16> to vector<16x32xbf16>
    %c0_14 = arith.constant 0 : index
    %c0_15 = arith.constant 0 : index
    %c0_16 = arith.constant 0 : index
    %13 = vector.load %arg4[%c0_14, %c0_15, %c0_16] : memref<2x16x16xbf16, #tpu.memory_space<vmem>>, vector<1x16x16xbf16>
    %14 = vector.shape_cast %13 : vector<1x16x16xbf16> to vector<16x16xbf16>
    %c0_17 = arith.constant 0 : index
    %c0_18 = arith.constant 0 : index
    %c0_19 = arith.constant 0 : index
    %15 = vector.load %arg5[%c0_17, %c0_18, %c0_19] : memref<2x1x16xf32, #tpu.memory_space<vmem>>, vector<1x1x16xf32>
    %16 = vector.shape_cast %15 : vector<1x1x16xf32> to vector<1x16xf32>
    %cst_20 = arith.constant dense<0.000000e+00> : vector<16x64xf32>
    %17 = tpu.matmul %10, %4, %cst_20 {dimension_numbers = #tpu.dot_dimension_numbers<[1], [0], [0], [1], [0, 0, 1, 1], [], []>} : vector<16x32xbf16>, vector<32x64xbf16>, vector<16x64xf32> -> vector<16x64xf32>
    %cst_21 = arith.constant dense<0.000000e+00> : vector<16x64xf32>
    %18 = tpu.matmul %12, %4, %cst_21 {dimension_numbers = #tpu.dot_dimension_numbers<[1], [0], [0], [1], [0, 0, 1, 1], [], []>} : vector<16x32xbf16>, vector<32x64xbf16>, vector<16x64xf32> -> vector<16x64xf32>
    %19 = vector.extract_strided_slice %17 {offsets = [0, 0], sizes = [16, 32], strides = [1, 1]} : vector<16x64xf32> to vector<16x32xf32>
    %20 = vector.extract_strided_slice %17 {offsets = [0, 32], sizes = [16, 32], strides = [1, 1]} : vector<16x64xf32> to vector<16x32xf32>
    %21 = vector.extract_strided_slice %18 {offsets = [0, 0], sizes = [16, 32], strides = [1, 1]} : vector<16x64xf32> to vector<16x32xf32>
    %22 = vector.extract_strided_slice %18 {offsets = [0, 32], sizes = [16, 32], strides = [1, 1]} : vector<16x64xf32> to vector<16x32xf32>
    %cst_22 = arith.constant dense<0.000000e+00> : vector<16x32xf32>
    %23 = tpu.matmul %14, %19, %cst_22 {dimension_numbers = #tpu.dot_dimension_numbers<[1], [0], [0], [1], [0, 0, 1, 1], [], []>} : vector<16x16xbf16>, vector<16x32xf32>, vector<16x32xf32> -> vector<16x32xf32>
    %24 = vector.broadcast %5 : vector<1x32xf32> to vector<16x32xf32>
    %25 = arith.addf %23, %24 : vector<16x32xf32>
    %cst_23 = arith.constant 0.000000e+00 : f32
    %26 = vector.broadcast %cst_23 : f32 to vector<16x32xf32>
    %27 = arith.cmpf ogt, %25, %26 : vector<16x32xf32>
    %28 = vector.broadcast %0 : f32 to vector<16x32xf32>
    %29 = arith.mulf %28, %25 : vector<16x32xf32>
    %30 = arith.select %27, %25, %29 : vector<16x32xi1>, vector<16x32xf32>
    %cst_24 = arith.constant dense<0.000000e+00> : vector<16x32xf32>
    %31 = tpu.matmul %14, %21, %cst_24 {dimension_numbers = #tpu.dot_dimension_numbers<[1], [0], [0], [1], [0, 0, 1, 1], [], []>} : vector<16x16xbf16>, vector<16x32xf32>, vector<16x32xf32> -> vector<16x32xf32>
    %32 = vector.broadcast %5 : vector<1x32xf32> to vector<16x32xf32>
    %33 = arith.addf %31, %32 : vector<16x32xf32>
    %cst_25 = arith.constant 0.000000e+00 : f32
    %34 = vector.broadcast %cst_25 : f32 to vector<16x32xf32>
    %35 = arith.cmpf ogt, %33, %34 : vector<16x32xf32>
    %36 = vector.broadcast %0 : f32 to vector<16x32xf32>
    %37 = arith.mulf %36, %33 : vector<16x32xf32>
    %38 = arith.select %35, %33, %37 : vector<16x32xi1>, vector<16x32xf32>
    %c0_26 = arith.constant 0 : index
    %c0_27 = arith.constant 0 : index
    %c0_28 = arith.constant 0 : index
    %39 = vector.load %arg10[%c0_26, %c0_27, %c0_28] : memref<2x16x32xf32, #tpu.memory_space<vmem>>, vector<1x16x32xf32>
    %40 = vector.shape_cast %39 : vector<1x16x32xf32> to vector<16x32xf32>
    %41 = vector.shape_cast %30 : vector<16x32xf32> to vector<1x16x32xf32>
    tpu.vector_store %arg10[%c0_26, %c0_27, %c0_28], %41 {strides = array<i32>} : memref<2x16x32xf32, #tpu.memory_space<vmem>>, vector<1x16x32xf32>,
    %cst_29 = arith.constant dense<0.000000e+00> : vector<1x32xf32>
    %42 = tpu.matmul %16, %30, %cst_29 {dimension_numbers = #tpu.dot_dimension_numbers<[1], [0], [0], [1], [0, 0, 1, 1], [], []>} : vector<1x16xf32>, vector<16x32xf32>, vector<1x32xf32> -> vector<1x32xf32>
    %43 = arith.negf %42 : vector<1x32xf32>
    %44 = math.exp %43 : vector<1x32xf32>
    %cst_30 = arith.constant 1.000000e+00 : f32
    %45 = vector.broadcast %cst_30 : f32 to vector<1x32xf32>
    %46 = arith.addf %45, %44 : vector<1x32xf32>
    %47 = arith.divf %45, %46 : vector<1x32xf32>
    %cst_31 = arith.constant dense<0.000000e+00> : vector<1x32xf32>
    %48 = tpu.matmul %47, %6, %cst_31 {dimension_numbers = #tpu.dot_dimension_numbers<[1], [0], [0], [1], [0, 0, 1, 1], [], []>} : vector<1x32xf32>, vector<32x32xbf16>, vector<1x32xf32> -> vector<1x32xf32>
    %cst_32 = arith.constant dense<0.000000e+00> : vector<1x32xf32>
    %49 = tpu.matmul %47, %7, %cst_32 {dimension_numbers = #tpu.dot_dimension_numbers<[1], [0], [0], [1], [0, 0, 1, 1], [], []>} : vector<1x32xf32>, vector<32x32xbf16>, vector<1x32xf32> -> vector<1x32xf32>
    %cst_33 = arith.constant dense<0.000000e+00> : vector<1x16xf32>
    %50 = tpu.matmul %48, %30, %cst_33 {dimension_numbers = #tpu.dot_dimension_numbers<[1], [1], [0], [0], [0, 0, 1, 0], [], []>} : vector<1x32xf32>, vector<16x32xf32>, vector<1x16xf32> -> vector<1x16xf32>
    %51 = vector.broadcast %1 : f32 to vector<1x16xf32>
    %52 = arith.addf %50, %51 : vector<1x16xf32>
    %c0_34 = arith.constant 0 : index
    %c0_35 = arith.constant 0 : index
    %c0_36 = arith.constant 0 : index
    %53 = vector.load %arg11[%c0_34, %c0_35, %c0_36] : memref<2x2x16xf32, #tpu.memory_space<vmem>>, vector<1x1x16xf32>
    %54 = vector.shape_cast %53 : vector<1x1x16xf32> to vector<1x16xf32>
    %55 = vector.shape_cast %52 : vector<1x16xf32> to vector<1x1x16xf32>
    tpu.vector_store %arg11[%c0_34, %c0_35, %c0_36], %55 {strides = array<i32>} : memref<2x2x16xf32, #tpu.memory_space<vmem>>, vector<1x1x16xf32>,
    %cst_37 = arith.constant dense<0.000000e+00> : vector<1x16xf32>
    %56 = tpu.matmul %48, %38, %cst_37 {dimension_numbers = #tpu.dot_dimension_numbers<[1], [1], [0], [0], [0, 0, 1, 0], [], []>} : vector<1x32xf32>, vector<16x32xf32>, vector<1x16xf32> -> vector<1x16xf32>
    %57 = vector.broadcast %1 : f32 to vector<1x16xf32>
    %58 = arith.addf %56, %57 : vector<1x16xf32>
    %c0_38 = arith.constant 0 : index
    %c1_39 = arith.constant 1 : index
    %c0_40 = arith.constant 0 : index
    %59 = vector.load %arg11[%c0_38, %c1_39, %c0_40] : memref<2x2x16xf32, #tpu.memory_space<vmem>>, vector<1x1x16xf32>
    %60 = vector.shape_cast %59 : vector<1x1x16xf32> to vector<1x16xf32>
    %61 = vector.shape_cast %58 : vector<1x16xf32> to vector<1x1x16xf32>
    tpu.vector_store %arg11[%c0_38, %c1_39, %c0_40], %61 {strides = array<i32>} : memref<2x2x16xf32, #tpu.memory_space<vmem>>, vector<1x1x16xf32>,
    %62 = arith.mulf %20, %30 : vector<16x32xf32>
    %cst_41 = arith.constant dense<0.000000e+00> : vector<1x16xf32>
    %63 = tpu.matmul %8, %62, %cst_41 {dimension_numbers = #tpu.dot_dimension_numbers<[1], [1], [0], [0], [0, 0, 1, 0], [], []>} : vector<1x32xf32>, vector<16x32xf32>, vector<1x16xf32> -> vector<1x16xf32>
    %64 = vector.broadcast %2 : f32 to vector<1x16xf32>
    %65 = arith.addf %63, %64 : vector<1x16xf32>
    %c0_42 = arith.constant 0 : index
    %c0_43 = arith.constant 0 : index
    %c0_44 = arith.constant 0 : index
    %66 = vector.load %arg12[%c0_42, %c0_43, %c0_44] : memref<2x2x16xf32, #tpu.memory_space<vmem>>, vector<1x1x16xf32>
    %67 = vector.shape_cast %66 : vector<1x1x16xf32> to vector<1x16xf32>
    %68 = vector.shape_cast %65 : vector<1x16xf32> to vector<1x1x16xf32>
    tpu.vector_store %arg12[%c0_42, %c0_43, %c0_44], %68 {strides = array<i32>} : memref<2x2x16xf32, #tpu.memory_space<vmem>>, vector<1x1x16xf32>,
    %69 = arith.mulf %22, %30 : vector<16x32xf32>
    %cst_45 = arith.constant dense<0.000000e+00> : vector<1x16xf32>
    %70 = tpu.matmul %8, %69, %cst_45 {dimension_numbers = #tpu.dot_dimension_numbers<[1], [1], [0], [0], [0, 0, 1, 0], [], []>} : vector<1x32xf32>, vector<16x32xf32>, vector<1x16xf32> -> vector<1x16xf32>
    %71 = vector.broadcast %2 : f32 to vector<1x16xf32>
    %72 = arith.addf %70, %71 : vector<1x16xf32>
    %c0_46 = arith.constant 0 : index
    %c1_47 = arith.constant 1 : index
    %c0_48 = arith.constant 0 : index
    %73 = vector.load %arg12[%c0_46, %c1_47, %c0_48] : memref<2x2x16xf32, #tpu.memory_space<vmem>>, vector<1x1x16xf32>
    %74 = vector.shape_cast %73 : vector<1x1x16xf32> to vector<1x16xf32>
    %75 = vector.shape_cast %72 : vector<1x16xf32> to vector<1x1x16xf32>
    tpu.vector_store %arg12[%c0_46, %c1_47, %c0_48], %75 {strides = array<i32>} : memref<2x2x16xf32, #tpu.memory_space<vmem>>, vector<1x1x16xf32>,
    %76 = arith.extf %10 : vector<16x32xbf16> to vector<16x32xf32>
    %cst_49 = arith.constant dense<0.000000e+00> : vector<1x16xf32>
    %77 = tpu.matmul %49, %76, %cst_49 {dimension_numbers = #tpu.dot_dimension_numbers<[1], [1], [0], [0], [0, 0, 1, 0], [], []>} : vector<1x32xf32>, vector<16x32xf32>, vector<1x16xf32> -> vector<1x16xf32>
    %78 = vector.broadcast %3 : f32 to vector<1x16xf32>
    %79 = arith.addf %77, %78 : vector<1x16xf32>
    %c0_50 = arith.constant 0 : index
    %c0_51 = arith.constant 0 : index
    %c0_52 = arith.constant 0 : index
    %80 = vector.load %arg13[%c0_50, %c0_51, %c0_52] : memref<2x2x16xf32, #tpu.memory_space<vmem>>, vector<1x1x16xf32>
    %81 = vector.shape_cast %80 : vector<1x1x16xf32> to vector<1x16xf32>
    %82 = vector.shape_cast %79 : vector<1x16xf32> to vector<1x1x16xf32>
    tpu.vector_store %arg13[%c0_50, %c0_51, %c0_52], %82 {strides = array<i32>} : memref<2x2x16xf32, #tpu.memory_space<vmem>>, vector<1x1x16xf32>,
    %83 = arith.extf %12 : vector<16x32xbf16> to vector<16x32xf32>
    %cst_53 = arith.constant dense<0.000000e+00> : vector<1x16xf32>
    %84 = tpu.matmul %49, %83, %cst_53 {dimension_numbers = #tpu.dot_dimension_numbers<[1], [1], [0], [0], [0, 0, 1, 0], [], []>} : vector<1x32xf32>, vector<16x32xf32>, vector<1x16xf32> -> vector<1x16xf32>
    %85 = vector.broadcast %3 : f32 to vector<1x16xf32>
    %86 = arith.addf %84, %85 : vector<1x16xf32>
    %c0_54 = arith.constant 0 : index
    %c1_55 = arith.constant 1 : index
    %c0_56 = arith.constant 0 : index
    %87 = vector.load %arg13[%c0_54, %c1_55, %c0_56] : memref<2x2x16xf32, #tpu.memory_space<vmem>>, vector<1x1x16xf32>
    %88 = vector.shape_cast %87 : vector<1x1x16xf32> to vector<1x16xf32>
    %89 = vector.shape_cast %86 : vector<1x16xf32> to vector<1x1x16xf32>
    tpu.vector_store %arg13[%c0_54, %c1_55, %c0_56], %89 {strides = array<i32>} : memref<2x2x16xf32, #tpu.memory_space<vmem>>, vector<1x1x16xf32>,
    %c1_57 = arith.constant 1 : index
    %c0_58 = arith.constant 0 : index
    %c0_59 = arith.constant 0 : index
    %90 = vector.load %arg2[%c1_57, %c0_58, %c0_59] : memref<2x16x32xbf16, #tpu.memory_space<vmem>>, vector<1x16x32xbf16>
    %91 = vector.shape_cast %90 : vector<1x16x32xbf16> to vector<16x32xbf16>
    %c1_60 = arith.constant 1 : index
    %c0_61 = arith.constant 0 : index
    %c0_62 = arith.constant 0 : index
    %92 = vector.load %arg3[%c1_60, %c0_61, %c0_62] : memref<2x16x32xbf16, #tpu.memory_space<vmem>>, vector<1x16x32xbf16>
    %93 = vector.shape_cast %92 : vector<1x16x32xbf16> to vector<16x32xbf16>
    %c1_63 = arith.constant 1 : index
    %c0_64 = arith.constant 0 : index
    %c0_65 = arith.constant 0 : index
    %94 = vector.load %arg4[%c1_63, %c0_64, %c0_65] : memref<2x16x16xbf16, #tpu.memory_space<vmem>>, vector<1x16x16xbf16>
    %95 = vector.shape_cast %94 : vector<1x16x16xbf16> to vector<16x16xbf16>
    %c1_66 = arith.constant 1 : index
    %c0_67 = arith.constant 0 : index
    %c0_68 = arith.constant 0 : index
    %96 = vector.load %arg5[%c1_66, %c0_67, %c0_68] : memref<2x1x16xf32, #tpu.memory_space<vmem>>, vector<1x1x16xf32>
    %97 = vector.shape_cast %96 : vector<1x1x16xf32> to vector<1x16xf32>
    %cst_69 = arith.constant dense<0.000000e+00> : vector<16x64xf32>
    %98 = tpu.matmul %91, %4, %cst_69 {dimension_numbers = #tpu.dot_dimension_numbers<[1], [0], [0], [1], [0, 0, 1, 1], [], []>} : vector<16x32xbf16>, vector<32x64xbf16>, vector<16x64xf32> -> vector<16x64xf32>
    %cst_70 = arith.constant dense<0.000000e+00> : vector<16x64xf32>
    %99 = tpu.matmul %93, %4, %cst_70 {dimension_numbers = #tpu.dot_dimension_numbers<[1], [0], [0], [1], [0, 0, 1, 1], [], []>} : vector<16x32xbf16>, vector<32x64xbf16>, vector<16x64xf32> -> vector<16x64xf32>
    %100 = vector.extract_strided_slice %98 {offsets = [0, 0], sizes = [16, 32], strides = [1, 1]} : vector<16x64xf32> to vector<16x32xf32>
    %101 = vector.extract_strided_slice %98 {offsets = [0, 32], sizes = [16, 32], strides = [1, 1]} : vector<16x64xf32> to vector<16x32xf32>
    %102 = vector.extract_strided_slice %99 {offsets = [0, 0], sizes = [16, 32], strides = [1, 1]} : vector<16x64xf32> to vector<16x32xf32>
    %103 = vector.extract_strided_slice %99 {offsets = [0, 32], sizes = [16, 32], strides = [1, 1]} : vector<16x64xf32> to vector<16x32xf32>
    %cst_71 = arith.constant dense<0.000000e+00> : vector<16x32xf32>
    %104 = tpu.matmul %95, %100, %cst_71 {dimension_numbers = #tpu.dot_dimension_numbers<[1], [0], [0], [1], [0, 0, 1, 1], [], []>} : vector<16x16xbf16>, vector<16x32xf32>, vector<16x32xf32> -> vector<16x32xf32>
    %105 = vector.broadcast %5 : vector<1x32xf32> to vector<16x32xf32>
    %106 = arith.addf %104, %105 : vector<16x32xf32>
    %cst_72 = arith.constant 0.000000e+00 : f32
    %107 = vector.broadcast %cst_72 : f32 to vector<16x32xf32>
    %108 = arith.cmpf ogt, %106, %107 : vector<16x32xf32>
    %109 = vector.broadcast %0 : f32 to vector<16x32xf32>
    %110 = arith.mulf %109, %106 : vector<16x32xf32>
    %111 = arith.select %108, %106, %110 : vector<16x32xi1>, vector<16x32xf32>
    %cst_73 = arith.constant dense<0.000000e+00> : vector<16x32xf32>
    %112 = tpu.matmul %95, %102, %cst_73 {dimension_numbers = #tpu.dot_dimension_numbers<[1], [0], [0], [1], [0, 0, 1, 1], [], []>} : vector<16x16xbf16>, vector<16x32xf32>, vector<16x32xf32> -> vector<16x32xf32>
    %113 = vector.broadcast %5 : vector<1x32xf32> to vector<16x32xf32>
    %114 = arith.addf %112, %113 : vector<16x32xf32>
    %cst_74 = arith.constant 0.000000e+00 : f32
    %115 = vector.broadcast %cst_74 : f32 to vector<16x32xf32>
    %116 = arith.cmpf ogt, %114, %115 : vector<16x32xf32>
    %117 = vector.broadcast %0 : f32 to vector<16x32xf32>
    %118 = arith.mulf %117, %114 : vector<16x32xf32>
    %119 = arith.select %116, %114, %118 : vector<16x32xi1>, vector<16x32xf32>
    %c1_75 = arith.constant 1 : index
    %c0_76 = arith.constant 0 : index
    %c0_77 = arith.constant 0 : index
    %120 = vector.load %arg10[%c1_75, %c0_76, %c0_77] : memref<2x16x32xf32, #tpu.memory_space<vmem>>, vector<1x16x32xf32>
    %121 = vector.shape_cast %120 : vector<1x16x32xf32> to vector<16x32xf32>
    %122 = vector.shape_cast %111 : vector<16x32xf32> to vector<1x16x32xf32>
    tpu.vector_store %arg10[%c1_75, %c0_76, %c0_77], %122 {strides = array<i32>} : memref<2x16x32xf32, #tpu.memory_space<vmem>>, vector<1x16x32xf32>,
    %cst_78 = arith.constant dense<0.000000e+00> : vector<1x32xf32>
    %123 = tpu.matmul %97, %111, %cst_78 {dimension_numbers = #tpu.dot_dimension_numbers<[1], [0], [0], [1], [0, 0, 1, 1], [], []>} : vector<1x16xf32>, vector<16x32xf32>, vector<1x32xf32> -> vector<1x32xf32>
    %124 = arith.negf %123 : vector<1x32xf32>
    %125 = math.exp %124 : vector<1x32xf32>
    %cst_79 = arith.constant 1.000000e+00 : f32
    %126 = vector.broadcast %cst_79 : f32 to vector<1x32xf32>
    %127 = arith.addf %126, %125 : vector<1x32xf32>
    %128 = arith.divf %126, %127 : vector<1x32xf32>
    %cst_80 = arith.constant dense<0.000000e+00> : vector<1x32xf32>
    %129 = tpu.matmul %128, %6, %cst_80 {dimension_numbers = #tpu.dot_dimension_numbers<[1], [0], [0], [1], [0, 0, 1, 1], [], []>} : vector<1x32xf32>, vector<32x32xbf16>, vector<1x32xf32> -> vector<1x32xf32>
    %cst_81 = arith.constant dense<0.000000e+00> : vector<1x32xf32>
    %130 = tpu.matmul %128, %7, %cst_81 {dimension_numbers = #tpu.dot_dimension_numbers<[1], [0], [0], [1], [0, 0, 1, 1], [], []>} : vector<1x32xf32>, vector<32x32xbf16>, vector<1x32xf32> -> vector<1x32xf32>
    %cst_82 = arith.constant dense<0.000000e+00> : vector<1x16xf32>
    %131 = tpu.matmul %129, %111, %cst_82 {dimension_numbers = #tpu.dot_dimension_numbers<[1], [1], [0], [0], [0, 0, 1, 0], [], []>} : vector<1x32xf32>, vector<16x32xf32>, vector<1x16xf32> -> vector<1x16xf32>
    %132 = vector.broadcast %1 : f32 to vector<1x16xf32>
    %133 = arith.addf %131, %132 : vector<1x16xf32>
    %c1_83 = arith.constant 1 : index
    %c0_84 = arith.constant 0 : index
    %c0_85 = arith.constant 0 : index
    %134 = vector.load %arg11[%c1_83, %c0_84, %c0_85] : memref<2x2x16xf32, #tpu.memory_space<vmem>>, vector<1x1x16xf32>
    %135 = vector.shape_cast %134 : vector<1x1x16xf32> to vector<1x16xf32>
    %136 = vector.shape_cast %133 : vector<1x16xf32> to vector<1x1x16xf32>
    tpu.vector_store %arg11[%c1_83, %c0_84, %c0_85], %136 {strides = array<i32>} : memref<2x2x16xf32, #tpu.memory_space<vmem>>, vector<1x1x16xf32>,
    %cst_86 = arith.constant dense<0.000000e+00> : vector<1x16xf32>
    %137 = tpu.matmul %129, %119, %cst_86 {dimension_numbers = #tpu.dot_dimension_numbers<[1], [1], [0], [0], [0, 0, 1, 0], [], []>} : vector<1x32xf32>, vector<16x32xf32>, vector<1x16xf32> -> vector<1x16xf32>
    %138 = vector.broadcast %1 : f32 to vector<1x16xf32>
    %139 = arith.addf %137, %138 : vector<1x16xf32>
    %c1_87 = arith.constant 1 : index
    %c1_88 = arith.constant 1 : index
    %c0_89 = arith.constant 0 : index
    %140 = vector.load %arg11[%c1_87, %c1_88, %c0_89] : memref<2x2x16xf32, #tpu.memory_space<vmem>>, vector<1x1x16xf32>
    %141 = vector.shape_cast %140 : vector<1x1x16xf32> to vector<1x16xf32>
    %142 = vector.shape_cast %139 : vector<1x16xf32> to vector<1x1x16xf32>
    tpu.vector_store %arg11[%c1_87, %c1_88, %c0_89], %142 {strides = array<i32>} : memref<2x2x16xf32, #tpu.memory_space<vmem>>, vector<1x1x16xf32>,
    %143 = arith.mulf %101, %111 : vector<16x32xf32>
    %cst_90 = arith.constant dense<0.000000e+00> : vector<1x16xf32>
    %144 = tpu.matmul %8, %143, %cst_90 {dimension_numbers = #tpu.dot_dimension_numbers<[1], [1], [0], [0], [0, 0, 1, 0], [], []>} : vector<1x32xf32>, vector<16x32xf32>, vector<1x16xf32> -> vector<1x16xf32>
    %145 = vector.broadcast %2 : f32 to vector<1x16xf32>
    %146 = arith.addf %144, %145 : vector<1x16xf32>
    %c1_91 = arith.constant 1 : index
    %c0_92 = arith.constant 0 : index
    %c0_93 = arith.constant 0 : index
    %147 = vector.load %arg12[%c1_91, %c0_92, %c0_93] : memref<2x2x16xf32, #tpu.memory_space<vmem>>, vector<1x1x16xf32>
    %148 = vector.shape_cast %147 : vector<1x1x16xf32> to vector<1x16xf32>
    %149 = vector.shape_cast %146 : vector<1x16xf32> to vector<1x1x16xf32>
    tpu.vector_store %arg12[%c1_91, %c0_92, %c0_93], %149 {strides = array<i32>} : memref<2x2x16xf32, #tpu.memory_space<vmem>>, vector<1x1x16xf32>,
    %150 = arith.mulf %103, %111 : vector<16x32xf32>
    %cst_94 = arith.constant dense<0.000000e+00> : vector<1x16xf32>
    %151 = tpu.matmul %8, %150, %cst_94 {dimension_numbers = #tpu.dot_dimension_numbers<[1], [1], [0], [0], [0, 0, 1, 0], [], []>} : vector<1x32xf32>, vector<16x32xf32>, vector<1x16xf32> -> vector<1x16xf32>
    %152 = vector.broadcast %2 : f32 to vector<1x16xf32>
    %153 = arith.addf %151, %152 : vector<1x16xf32>
    %c1_95 = arith.constant 1 : index
    %c1_96 = arith.constant 1 : index
    %c0_97 = arith.constant 0 : index
    %154 = vector.load %arg12[%c1_95, %c1_96, %c0_97] : memref<2x2x16xf32, #tpu.memory_space<vmem>>, vector<1x1x16xf32>
    %155 = vector.shape_cast %154 : vector<1x1x16xf32> to vector<1x16xf32>
    %156 = vector.shape_cast %153 : vector<1x16xf32> to vector<1x1x16xf32>
    tpu.vector_store %arg12[%c1_95, %c1_96, %c0_97], %156 {strides = array<i32>} : memref<2x2x16xf32, #tpu.memory_space<vmem>>, vector<1x1x16xf32>,
    %157 = arith.extf %91 : vector<16x32xbf16> to vector<16x32xf32>
    %cst_98 = arith.constant dense<0.000000e+00> : vector<1x16xf32>
    %158 = tpu.matmul %130, %157, %cst_98 {dimension_numbers = #tpu.dot_dimension_numbers<[1], [1], [0], [0], [0, 0, 1, 0], [], []>} : vector<1x32xf32>, vector<16x32xf32>, vector<1x16xf32> -> vector<1x16xf32>
    %159 = vector.broadcast %3 : f32 to vector<1x16xf32>
    %160 = arith.addf %158, %159 : vector<1x16xf32>
    %c1_99 = arith.constant 1 : index
    %c0_100 = arith.constant 0 : index
    %c0_101 = arith.constant 0 : index
    %161 = vector.load %arg13[%c1_99, %c0_100, %c0_101] : memref<2x2x16xf32, #tpu.memory_space<vmem>>, vector<1x1x16xf32>
    %162 = vector.shape_cast %161 : vector<1x1x16xf32> to vector<1x16xf32>
    %163 = vector.shape_cast %160 : vector<1x16xf32> to vector<1x1x16xf32>
    tpu.vector_store %arg13[%c1_99, %c0_100, %c0_101], %163 {strides = array<i32>} : memref<2x2x16xf32, #tpu.memory_space<vmem>>, vector<1x1x16xf32>,
    %164 = arith.extf %93 : vector<16x32xbf16> to vector<16x32xf32>
    %cst_102 = arith.constant dense<0.000000e+00> : vector<1x16xf32>
    %165 = tpu.matmul %130, %164, %cst_102 {dimension_numbers = #tpu.dot_dimension_numbers<[1], [1], [0], [0], [0, 0, 1, 0], [], []>} : vector<1x32xf32>, vector<16x32xf32>, vector<1x16xf32> -> vector<1x16xf32>
    %166 = vector.broadcast %3 : f32 to vector<1x16xf32>
    %167 = arith.addf %165, %166 : vector<1x16xf32>
    %c1_103 = arith.constant 1 : index
    %c1_104 = arith.constant 1 : index
    %c0_105 = arith.constant 0 : index
    %168 = vector.load %arg13[%c1_103, %c1_104, %c0_105] : memref<2x2x16xf32, #tpu.memory_space<vmem>>, vector<1x1x16xf32>
    %169 = vector.shape_cast %168 : vector<1x1x16xf32> to vector<1x16xf32>
    %170 = vector.shape_cast %167 : vector<1x16xf32> to vector<1x1x16xf32>
    tpu.vector_store %arg13[%c1_103, %c1_104, %c0_105], %170 {strides = array<i32>} : memref<2x2x16xf32, #tpu.memory_space<vmem>>, vector<1x1x16xf32>,
    return
  }
  func.func @transform_0(%arg0: i32) -> i32 {
    %c0_i32 = arith.constant 0 : i32
    %c0_i32_0 = arith.constant 0 : i32
    return %c0_i32 : i32
  }
  func.func @transform_1(%arg0: i32) -> (i32, i32, i32) {
    %c0_i32 = arith.constant 0 : i32
    %c0_i32_0 = arith.constant 0 : i32
    %c0_i32_1 = arith.constant 0 : i32
    return %arg0, %c0_i32, %c0_i32_0 : i32, i32, i32
  }
  func.func @transform_2(%arg0: i32) -> (i32, i32, i32) {
    %c0_i32 = arith.constant 0 : i32
    %c0_i32_0 = arith.constant 0 : i32
    %c0_i32_1 = arith.constant 0 : i32
    return %arg0, %c0_i32, %c0_i32_0 : i32, i32, i32
  }
  func.func @transform_3(%arg0: i32) -> (i32, i32, i32) {
    %c0_i32 = arith.constant 0 : i32
    %c0_i32_0 = arith.constant 0 : i32
    %c0_i32_1 = arith.constant 0 : i32
    return %arg0, %c0_i32, %c0_i32_0 : i32, i32, i32
  }
  func.func @transform_4(%arg0: i32) -> (i32, i32, i32) {
    %c0_i32 = arith.constant 0 : i32
    %c0_i32_0 = arith.constant 0 : i32
    %c0_i32_1 = arith.constant 0 : i32
    return %arg0, %c0_i32, %c0_i32_0 : i32, i32, i32
  }
  func.func @transform_5(%arg0: i32) -> (i32, i32) {
    %c0_i32 = arith.constant 0 : i32
    %c0_i32_0 = arith.constant 0 : i32
    %c0_i32_1 = arith.constant 0 : i32
    return %c0_i32, %c0_i32_0 : i32, i32
  }
  func.func @transform_6(%arg0: i32) -> (i32, i32) {
    %c0_i32 = arith.constant 0 : i32
    %c0_i32_0 = arith.constant 0 : i32
    %c0_i32_1 = arith.constant 0 : i32
    return %c0_i32, %c0_i32_0 : i32, i32
  }
  func.func @transform_7(%arg0: i32) -> (i32, i32) {
    %c0_i32 = arith.constant 0 : i32
    %c0_i32_0 = arith.constant 0 : i32
    %c0_i32_1 = arith.constant 0 : i32
    return %c0_i32, %c0_i32_0 : i32, i32
  }
  func.func @transform_8(%arg0: i32) -> (i32, i32) {
    %c0_i32 = arith.constant 0 : i32
    %c0_i32_0 = arith.constant 0 : i32
    %c0_i32_1 = arith.constant 0 : i32
    return %c0_i32, %c0_i32_0 : i32, i32
  }
  func.func @transform_9(%arg0: i32) -> (i32, i32, i32) {
    %c0_i32 = arith.constant 0 : i32
    %c0_i32_0 = arith.constant 0 : i32
    %c0_i32_1 = arith.constant 0 : i32
    return %arg0, %c0_i32, %c0_i32_0 : i32, i32, i32
  }
  func.func @transform_10(%arg0: i32) -> (i32, i32, i32) {
    %c0_i32 = arith.constant 0 : i32
    %c0_i32_0 = arith.constant 0 : i32
    %c0_i32_1 = arith.constant 0 : i32
    return %arg0, %c0_i32, %c0_i32_0 : i32, i32, i32
  }
  func.func @transform_11(%arg0: i32) -> (i32, i32, i32) {
    %c0_i32 = arith.constant 0 : i32
    %c0_i32_0 = arith.constant 0 : i32
    %c0_i32_1 = arith.constant 0 : i32
    return %arg0, %c0_i32, %c0_i32_0 : i32, i32, i32
  }
  func.func @transform_12(%arg0: i32) -> (i32, i32, i32) {
    %c0_i32 = arith.constant 0 : i32
    %c0_i32_0 = arith.constant 0 : i32
    %c0_i32_1 = arith.constant 0 : i32
    return %arg0, %c0_i32, %c0_i32_0 : i32, i32, i32
  }
}

</mosaic_0001>

<llo_original>
// kernel: tpu_custom_call.1
$region0: #{tpu_custom_call.1}
  #allocation0 [shape = 'u32[]', space=smem, size = 0x4, offset = 0x4, fixed_abs, tag = 'smem constant byte address 0x4 - core index']
  #allocation1 [shape = 'u32[144,128]{1,0:T(1,128)}', space=vmem, size = 0x12000, scoped, tag = 'internal scratch']
  %s0 = inlined_call_operand.hbm [shape: f32[4], index: 0, kind: input, shape index: {}]
  %s1 = inlined_call_operand.hbm [shape: bf16[2,16,32], index: 1, kind: input, shape index: {}]
  %s2 = inlined_call_operand.hbm [shape: bf16[2,16,32], index: 2, kind: input, shape index: {}]
  %s3 = inlined_call_operand.hbm [shape: bf16[2,16,16], index: 3, kind: input, shape index: {}]
  %s4 = inlined_call_operand.vmem [shape: f32[2,1,16], index: 4, kind: input, shape index: {}]
  %s5 = inlined_call_operand.vmem [shape: bf16[32,64], index: 5, kind: input, shape index: {}]
  %s6 = inlined_call_operand.vmem [shape: f32[1,32], index: 6, kind: input, shape index: {}]
  %s7 = inlined_call_operand.hbm [shape: bf16[32,32], index: 7, kind: input, shape index: {}]
  %s8 = inlined_call_operand.hbm [shape: bf16[32,32], index: 8, kind: input, shape index: {}]
  %s9 = inlined_call_operand.hbm [shape: f32[2,16,32], index: 9, kind: output, shape index: {0}]
  %s10 = inlined_call_operand.hbm [shape: f32[2,2,16], index: 10, kind: output, shape index: {1}]
  %s11 = inlined_call_operand.hbm [shape: f32[2,2,16], index: 11, kind: output, shape index: {2}]
  %s12 = inlined_call_operand.hbm [shape: f32[2,2,16], index: 12, kind: output, shape index: {3}]
  %13 = xla_tuple %s9, %s10, %s11, %s12
  %s14 = sld [smem:[#allocation0]]
  $region94: #{tpu_custom_call.1} parent=0
    _
  %s16 = ssub.s32 1, %s14
  %s17 = scalar_select 0, %s16, %s14
  $region1: #{tpu_custom_call.1} parent=0
    #allocation2 [shape = 'u8[512]{0}', space=smem, size = 0x200, scoped, tag = 'input window, operand 0, single buffered']
    #allocation3 [shape = 's32[1]{0}', space=sflag, size = 0x4, scoped, tag = 'scoped memory for tpu_custom_call.1']
    #allocation4 [shape = 's32[1]{0}', space=sflag, size = 0x4, scoped, tag = 'scoped memory for tpu_custom_call.1']
    #allocation5 [shape = 's32[1]{0}', space=sflag, size = 0x4, scoped, tag = 'scoped memory for tpu_custom_call.1']
    #allocation6 [shape = 'u8[8192]{0}', space=vmem, size = 0x2000, scoped, tag = 'input window, operand 1, single buffered']
    #allocation7 [shape = 'u8[8192]{0}', space=vmem, size = 0x2000, scoped, tag = 'input window, operand 2, single buffered']
    #allocation8 [shape = 's32[1]{0}', space=sflag, size = 0x4, scoped, tag = 'scoped memory for tpu_custom_call.1']
    #allocation9 [shape = 'u8[8192]{0}', space=vmem, size = 0x2000, scoped, tag = 'input window, operand 3, single buffered']
    #allocation10 [shape = 'u8[8192]{0}', space=vmem, size = 0x2000, scoped, tag = 'input window, operand 7, single buffered']
    #allocation11 [shape = 's32[1]{0}', space=sflag, size = 0x4, scoped, tag = 'scoped memory for tpu_custom_call.1']
    #allocation12 [shape = 'u8[8192]{0}', space=vmem, size = 0x2000, scoped, tag = 'input window, operand 8, single buffered']
    #allocation13 [shape = 'u8[16384]{0}', space=vmem, size = 0x4000, scoped, tag = 'output window, operand 0, single buffered']
    #allocation14 [shape = 'u8[2048]{0}', space=vmem, size = 0x800, scoped, tag = 'output window, operand 1, single buffered']
    #allocation15 [shape = 's32[1]{0}', space=sflag, size = 0x4, scoped, tag = 'scoped memory for tpu_custom_call.1']
    #allocation16 [shape = 'u8[2048]{0}', space=vmem, size = 0x800, scoped, tag = 'output window, operand 2, single buffered']
    #allocation17 [shape = 'u8[2048]{0}', space=vmem, size = 0x800, scoped, tag = 'output window, operand 3, single buffered']
    #allocation18 [shape = 's32[1]{0}', space=sflag, size = 0x4, scoped, tag = 'scoped memory for tpu_custom_call.1']
    %18 = vsyncpa [#allocation5], 0
    %19 = vsyncpa [#allocation3], 0
    %20 = vsyncpa [#allocation8], 0
    %21 = vsyncpa [#allocation11], 0
    %22 = vsyncpa [#allocation4], 0
    %23 = vsyncpa [#allocation15], 0
    %24 = vsyncpa [#allocation18], 0
    // Predicated region
    $region2: #{tpu_custom_call.1} parent=1 // pred_check
      _
    $region3: #{tpu_custom_call.1} parent=1 // pred_check_branch
      %26 = sbr.rel (0) target = $region5
    $region4: #{tpu_custom_call.1} parent=1 // pred_region
      %s28 = ssub.s32 16, 16
      %29 = vsyncadd [#allocation5], %s28
      %32 = dma.hbm_to_smem %s0, 16, [#allocation2], [#allocation5]
    $region5: #{tpu_custom_call.1} parent=1 // pred_fallthru
      _
    // Predicated region
    $region6: #{tpu_custom_call.1} parent=1 // pred_check
      _
    $region7: #{tpu_custom_call.1} parent=1 // pred_check_branch
      %34 = sbr.rel (0) target = $region9
    $region8: #{tpu_custom_call.1} parent=1 // pred_region
      %s36 = ssub.s32 256, 256
      %37 = vsyncadd [#allocation3], %s36
      %s38 = sshll.u32 [#allocation6], 4
      %s39 = int_to_ptr.vmem [resolvable:$true] %s38
      %44 = dma.hbm_to_vmem [thread:$0]  %s1, 256, %s39, [#allocation3], 64, 64, 4
    $region9: #{tpu_custom_call.1} parent=1 // pred_fallthru
      _
    // Predicated region
    $region10: #{tpu_custom_call.1} parent=1 // pred_check
      _
    $region11: #{tpu_custom_call.1} parent=1 // pred_check_branch
      %46 = sbr.rel (0) target = $region13
    $region12: #{tpu_custom_call.1} parent=1 // pred_region
      %s48 = ssub.s32 256, 256
      %49 = vsyncadd [#allocation8], %s48
      %s50 = sshll.u32 [#allocation7], 4
      %s51 = int_to_ptr.vmem [resolvable:$true] %s50
      %56 = dma.hbm_to_vmem [thread:$0]  %s2, 256, %s51, [#allocation8], 64, 64, 4
    $region13: #{tpu_custom_call.1} parent=1 // pred_fallthru
      _
    // Predicated region
    $region14: #{tpu_custom_call.1} parent=1 // pred_check
      _
    $region15: #{tpu_custom_call.1} parent=1 // pred_check_branch
      %58 = sbr.rel (0) target = $region17
    $region16: #{tpu_custom_call.1} parent=1 // pred_region
      %s60 = ssub.s32 256, 256
      %61 = vsyncadd [#allocation8], %s60
      %s62 = sshll.u32 [#allocation9], 4
      %s63 = int_to_ptr.vmem [resolvable:$true] %s62
      %68 = dma.hbm_to_vmem [thread:$0]  %s3, 256, %s63, [#allocation8], 64, 64, 4
    $region17: #{tpu_custom_call.1} parent=1 // pred_fallthru
      _
    // Predicated region
    $region18: #{tpu_custom_call.1} parent=1 // pred_check
      _
    $region19: #{tpu_custom_call.1} parent=1 // pred_check_branch
      %70 = sbr.rel (0) target = $region21
    $region20: #{tpu_custom_call.1} parent=1 // pred_region
      _
    $region21: #{tpu_custom_call.1} parent=1 // pred_fallthru
      _
    // Predicated region
    $region22: #{tpu_custom_call.1} parent=1 // pred_check
      _
    $region23: #{tpu_custom_call.1} parent=1 // pred_check_branch
      %72 = sbr.rel (0) target = $region25
    $region24: #{tpu_custom_call.1} parent=1 // pred_region
      _
    $region25: #{tpu_custom_call.1} parent=1 // pred_fallthru
      _
    // Predicated region
    $region26: #{tpu_custom_call.1} parent=1 // pred_check
      _
    $region27: #{tpu_custom_call.1} parent=1 // pred_check_branch
      %74 = sbr.rel (0) target = $region29
    $region28: #{tpu_custom_call.1} parent=1 // pred_region
      _
    $region29: #{tpu_custom_call.1} parent=1 // pred_fallthru
      _
    // Predicated region
    $region30: #{tpu_custom_call.1} parent=1 // pred_check
      _
    $region31: #{tpu_custom_call.1} parent=1 // pred_check_branch
      %76 = sbr.rel (0) target = $region33
    $region32: #{tpu_custom_call.1} parent=1 // pred_region
      %s78 = ssub.s32 256, 256
      %79 = vsyncadd [#allocation11], %s78
      %s80 = sshll.u32 [#allocation10], 4
      %s81 = int_to_ptr.vmem [resolvable:$true] %s80
      %86 = dma.hbm_to_vmem [thread:$0]  %s7, 256, %s81, [#allocation11], 64, 64, 4
    $region33: #{tpu_custom_call.1} parent=1 // pred_fallthru
      _
    // Predicated region
    $region34: #{tpu_custom_call.1} parent=1 // pred_check
      _
    $region35: #{tpu_custom_call.1} parent=1 // pred_check_branch
      %88 = sbr.rel (0) target = $region37
    $region36: #{tpu_custom_call.1} parent=1 // pred_region
      %s90 = ssub.s32 256, 256
      %91 = vsyncadd [#allocation11], %s90
      %s92 = sshll.u32 [#allocation12], 4
      %s93 = int_to_ptr.vmem [resolvable:$true] %s92
      %98 = dma.hbm_to_vmem [thread:$0]  %s8, 256, %s93, [#allocation11], 64, 64, 4
    $region37: #{tpu_custom_call.1} parent=1 // pred_fallthru
      _
    // Predicated region
    $region38: #{tpu_custom_call.1} parent=1 // pred_check
      _
    $region39: #{tpu_custom_call.1} parent=1 // pred_check_branch
      %100 = sbr.rel (0) target = $region41
    $region40: #{tpu_custom_call.1} parent=1 // pred_region
      %101 = dma.done [#allocation5], 16
    $region41: #{tpu_custom_call.1} parent=1 // pred_fallthru
      _
    // Predicated region
    $region42: #{tpu_custom_call.1} parent=1 // pred_check
      _
    $region43: #{tpu_custom_call.1} parent=1 // pred_check_branch
      %103 = sbr.rel (0) target = $region45
    $region44: #{tpu_custom_call.1} parent=1 // pred_region
      %104 = dma.done [#allocation3], 256
    $region45: #{tpu_custom_call.1} parent=1 // pred_fallthru
      _
    // Predicated region
    $region46: #{tpu_custom_call.1} parent=1 // pred_check
      _
    $region47: #{tpu_custom_call.1} parent=1 // pred_check_branch
      %106 = sbr.rel (0) target = $region49
    $region48: #{tpu_custom_call.1} parent=1 // pred_region
      %107 = dma.done [#allocation8], 256
    $region49: #{tpu_custom_call.1} parent=1 // pred_fallthru
      _
    // Predicated region
    $region50: #{tpu_custom_call.1} parent=1 // pred_check
      _
    $region51: #{tpu_custom_call.1} parent=1 // pred_check_branch
      %109 = sbr.rel (0) target = $region53
    $region52: #{tpu_custom_call.1} parent=1 // pred_region
      %110 = dma.done [#allocation8], 256
    $region53: #{tpu_custom_call.1} parent=1 // pred_fallthru
      _
    // Predicated region
    $region54: #{tpu_custom_call.1} parent=1 // pred_check
      _
    $region55: #{tpu_custom_call.1} parent=1 // pred_check_branch
      %112 = sbr.rel (0) target = $region57
    $region56: #{tpu_custom_call.1} parent=1 // pred_region
      %113 = dma.done [#allocation11], 256
    $region57: #{tpu_custom_call.1} parent=1 // pred_fallthru
      _
    // Predicated region
    $region58: #{tpu_custom_call.1} parent=1 // pred_check
      _
    $region59: #{tpu_custom_call.1} parent=1 // pred_check_branch
      %115 = sbr.rel (0) target = $region61
    $region60: #{tpu_custom_call.1} parent=1 // pred_region
      %116 = dma.done [#allocation11], 256
    $region61: #{tpu_custom_call.1} parent=1 // pred_fallthru
      _
    %117 = sfence
    %s119 = sld [smem:[#allocation2]]
    %s120 = sld [smem:[#allocation2 + $0x1]]
    %s121 = sld [smem:[#allocation2 + $0x2]]
    %s122 = sld [smem:[#allocation2 + $0x3]]
    %v123 = vld [vmem:[%s5] sm:$0xf]
    %v124 = vld [vmem:[%s5 + $0x4] sm:$0xf]
    %v125 = vld [vmem:[%s5 + $0x8] sm:$0xf]
    %v126 = vld [vmem:[%s5 + $0xc] sm:$0xf]
    %v127 = vld [vmem:[%s6] sm:$0x1]
    %v128 = vld [vmem:[#allocation10] sm:$0xf]
    %v129 = vld [vmem:[#allocation10 + $0x4] sm:$0xf]
    %v130 = vld [vmem:[#allocation10 + $0x8] sm:$0xf]
    %v131 = vld [vmem:[#allocation10 + $0xc] sm:$0xf]
    %v132 = vld [vmem:[#allocation12] sm:$0xf]
    %v133 = vld [vmem:[#allocation12 + $0x4] sm:$0xf]
    %v134 = vld [vmem:[#allocation12 + $0x8] sm:$0xf]
    %v135 = vld [vmem:[#allocation12 + $0xc] sm:$0xf]
    %v136 = vld [vmem:[#allocation6] sm:$0xf]
    %v137 = vld [vmem:[#allocation6 + $0x4] sm:$0xf]
    %v138 = vld [vmem:[#allocation7] sm:$0xf]
    %v139 = vld [vmem:[#allocation7 + $0x4] sm:$0xf]
    %v140 = vld [vmem:[#allocation9] sm:$0xf]
    %v141 = vld [vmem:[#allocation9 + $0x4] sm:$0xf]
    %v142 = vld [vmem:[%s4] sm:$0x1]
    %v145 = vunpack.c.l.b16 %v136
    %v146 = vunpack.c.l.b16 %v137
    %v147 = vpack.c.b16 %v146, %v145
    %v152 = vunpack.c.l.b16 %v123
    %v153 = vunpack.c.l.b16 %v124
    %v154 = vunpack.c.l.b16 %v125
    %v155 = vunpack.c.l.b16 %v126
    %v156 = vpack.c.b16 %v153, %v152
    %v157 = vpack.c.b16 %v155, %v154
    %vm160 = vcmask 261120
    %v162 = vsel %vm160, %v147, 0
    %164 = vmatprep.subr.bf16.mxu0 0
    %165 = vmatpush1.bf16.msra.mxu0 %v156
    %166 = vmatprep.subr.bf16.mxu0 0
    %167 = vmatpush1.bf16.msra.mxu0 %v157
    %168 = vmatprep.subr.bf16.mxu0 0
    %169 = vmatpush1.bf16.msra.mxu0 0
    %170 = vmatprep.subr.bf16.mxu0 0
    %171 = vmatpush1.bf16.msra.mxu0 0
    %172 = vmatprep.subr.bf16.mxu0 0
    %173 = vmatpush1.bf16.msra.mxu0 0
    %174 = vmatprep.subr.bf16.mxu0 0
    %175 = vmatpush1.bf16.msra.mxu0 0
    %176 = vmatprep.subr.bf16.mxu0 0
    %177 = vmatpush1.bf16.msra.mxu0 0
    %178 = vmatprep.subr.bf16.mxu0 0
    %179 = vmatpush1.bf16.msra.mxu0 0
    %180 = vmatprep.subr.bf16.mxu0 0
    %181 = vmatpush1.bf16.msra.mxu0 0
    %182 = vmatprep.subr.bf16.mxu0 0
    %183 = vmatpush1.bf16.msra.mxu0 0
    %184 = vmatprep.subr.bf16.mxu0 0
    %185 = vmatpush1.bf16.msra.mxu0 0
    %186 = vmatprep.subr.bf16.mxu0 0
    %187 = vmatpush1.bf16.msra.mxu0 0
    %188 = vmatprep.subr.bf16.mxu0 0
    %189 = vmatpush1.bf16.msra.mxu0 0
    %190 = vmatprep.subr.bf16.mxu0 0
    %191 = vmatpush1.bf16.msra.mxu0 0
    %192 = vmatprep.subr.bf16.mxu0 0
    %193 = vmatpush1.bf16.msra.mxu0 0
    %194 = vmatprep.subr.bf16.mxu0 0
    %195 = vmatpush1.bf16.msra.mxu0 0
    %196 = vmatprep.mubr.bf16.mxu0 0
    %197 = vmatmul.mubr.bf16.gmra.mrb[0].mxu0 %v162
    %v198 = vpop.f32.mrb[0].mxu0
    %v199 = vadd.f32 0.0, %v198
    %v200 = vpop.f32.mrb[0].mxu0
    %v201 = vpop.f32.mrb[0].mxu0
    %v202 = vadd.f32 0.0, %v201
    %v203 = vpop.f32.mrb[0].mxu0
    %204 = vdwg.mxu0
    %v207 = vunpack.c.l.b16 %v138
    %v208 = vunpack.c.l.b16 %v139
    %v209 = vpack.c.b16 %v208, %v207
    %v211 = vsel %vm160, %v209, 0
    %213 = vmatprep.subr.bf16.mxu0 0
    %214 = vmatpush1.bf16.msra.mxu0 %v156
    %215 = vmatprep.subr.bf16.mxu0 0
    %216 = vmatpush1.bf16.msra.mxu0 %v157
    %217 = vmatprep.subr.bf16.mxu0 0
    %218 = vmatpush1.bf16.msra.mxu0 0
    %219 = vmatprep.subr.bf16.mxu0 0
    %220 = vmatpush1.bf16.msra.mxu0 0
    %221 = vmatprep.subr.bf16.mxu0 0
    %222 = vmatpush1.bf16.msra.mxu0 0
    %223 = vmatprep.subr.bf16.mxu0 0
    %224 = vmatpush1.bf16.msra.mxu0 0
    %225 = vmatprep.subr.bf16.mxu0 0
    %226 = vmatpush1.bf16.msra.mxu0 0
    %227 = vmatprep.subr.bf16.mxu0 0
    %228 = vmatpush1.bf16.msra.mxu0 0
    %229 = vmatprep.subr.bf16.mxu0 0
    %230 = vmatpush1.bf16.msra.mxu0 0
    %231 = vmatprep.subr.bf16.mxu0 0
    %232 = vmatpush1.bf16.msra.mxu0 0
    %233 = vmatprep.subr.bf16.mxu0 0
    %234 = vmatpush1.bf16.msra.mxu0 0
    %235 = vmatprep.subr.bf16.mxu0 0
    %236 = vmatpush1.bf16.msra.mxu0 0
    %237 = vmatprep.subr.bf16.mxu0 0
    %238 = vmatpush1.bf16.msra.mxu0 0
    %239 = vmatprep.subr.bf16.mxu0 0
    %240 = vmatpush1.bf16.msra.mxu0 0
    %241 = vmatprep.subr.bf16.mxu0 0
    %242 = vmatpush1.bf16.msra.mxu0 0
    %243 = vmatprep.subr.bf16.mxu0 0
    %244 = vmatpush1.bf16.msra.mxu0 0
    %245 = vmatprep.mubr.bf16.mxu0 0
    %246 = vmatmul.mubr.bf16.gmra.mrb[0].mxu0 %v211
    %v247 = vpop.f32.mrb[0].mxu0
    %v248 = vadd.f32 0.0, %v247
    %v249 = vpop.f32.mrb[0].mxu0
    %v250 = vpop.f32.mrb[0].mxu0
    %v251 = vadd.f32 0.0, %v250
    %v252 = vpop.f32.mrb[0].mxu0
    %253 = vdwg.mxu0
    %v255 = vlaneseq
    %v256 = vshrl.u32 %v255, 7
    %v257 = vsub.s32 0, %v256
    %v258 = vrot.slane %v127, %v257
    %v262 = vunpack.c.l.b16 %v140
    %v263 = vunpack.c.l.b16 %v141
    %v264 = vpack.c.b16 %v263, %v262
    %vm265 = vcmask 130048
    %v267 = vsel %vm265, %v264, 0
    %269 = vmatprep.subr.mxu0 0.0
    %270 = vmatpush1.msra.mxu0 %v199
    %271 = vmatprep.subr.mxu0 0.0
    %272 = vmatpush1.msra.mxu0 %v202
    %273 = vmatprep.subr.mxu0 0.0
    %274 = vmatpush1.msra.mxu0 0.0
    %275 = vmatprep.subr.mxu0 0.0
    %276 = vmatpush1.msra.mxu0 0.0
    %277 = vmatprep.subr.mxu0 0.0
    %278 = vmatpush1.msra.mxu0 0.0
    %279 = vmatprep.subr.mxu0 0.0
    %280 = vmatpush1.msra.mxu0 0.0
    %281 = vmatprep.subr.mxu0 0.0
    %282 = vmatpush1.msra.mxu0 0.0
    %283 = vmatprep.subr.mxu0 0.0
    %284 = vmatpush1.msra.mxu0 0.0
    %285 = vmatprep.subr.mxu0 0.0
    %286 = vmatpush1.msra.mxu0 0.0
    %287 = vmatprep.subr.mxu0 0.0
    %288 = vmatpush1.msra.mxu0 0.0
    %289 = vmatprep.subr.mxu0 0.0
    %290 = vmatpush1.msra.mxu0 0.0
    %291 = vmatprep.subr.mxu0 0.0
    %292 = vmatpush1.msra.mxu0 0.0
    %293 = vmatprep.subr.mxu0 0.0
    %294 = vmatpush1.msra.mxu0 0.0
    %295 = vmatprep.subr.mxu0 0.0
    %296 = vmatpush1.msra.mxu0 0.0
    %297 = vmatprep.subr.mxu0 0.0
    %298 = vmatpush1.msra.mxu0 0.0
    %299 = vmatprep.subr.mxu0 0.0
    %300 = vmatpush1.msra.mxu0 0.0
    %301 = vmatprep.subr.mxu0 0.0
    %302 = vmatpush1.msra.mxu0 0.0
    %303 = vmatprep.subr.mxu0 0.0
    %304 = vmatpush1.msra.mxu0 0.0
    %305 = vmatprep.subr.mxu0 0.0
    %306 = vmatpush1.msra.mxu0 0.0
    %307 = vmatprep.subr.mxu0 0.0
    %308 = vmatpush1.msra.mxu0 0.0
    %309 = vmatprep.subr.mxu0 0.0
    %310 = vmatpush1.msra.mxu0 0.0
    %311 = vmatprep.subr.mxu0 0.0
    %312 = vmatpush1.msra.mxu0 0.0
    %313 = vmatprep.subr.mxu0 0.0
    %314 = vmatpush1.msra.mxu0 0.0
    %315 = vmatprep.subr.mxu0 0.0
    %316 = vmatpush1.msra.mxu0 0.0
    %317 = vmatprep.subr.mxu0 0.0
    %318 = vmatpush1.msra.mxu0 0.0
    %319 = vmatprep.subr.mxu0 0.0
    %320 = vmatpush1.msra.mxu0 0.0
    %321 = vmatprep.subr.mxu0 0.0
    %322 = vmatpush1.msra.mxu0 0.0
    %323 = vmatprep.subr.mxu0 0.0
    %324 = vmatpush1.msra.mxu0 0.0
    %325 = vmatprep.subr.mxu0 0.0
    %326 = vmatpush1.msra.mxu0 0.0
    %327 = vmatprep.subr.mxu0 0.0
    %328 = vmatpush1.msra.mxu0 0.0
    %329 = vmatprep.subr.mxu0 0.0
    %330 = vmatpush1.msra.mxu0 0.0
    %331 = vmatprep.subr.mxu0 0.0
    %332 = vmatpush1.msra.mxu0 0.0
    %333 = vmatprep.mubr.bf16.mxu0 0
    %334 = vmatmul.mubr.bf16.gmra.mrb[0].mxu0 %v267
    %v335 = vpop.f32.mrb[0].mxu0
    %v336 = vadd.f32 %v258, %v335
    %v337 = vpop.f32.mrb[0].mxu0
    %v338 = vpop.f32.mrb[0].mxu0
    %v339 = vadd.f32 %v258, %v338
    %v340 = vpop.f32.mrb[0].mxu0
    %341 = vdwg.mxu0
    %vm342 = vcmp.gt.f32.partialorder %v336, 0.0
    %vm343 = vcmp.gt.f32.partialorder %v339, 0.0
    %v344 = vstv %s119
    %v345 = vmul.f32 %v344, %v336
    %v346 = vmul.f32 %v344, %v339
    %v347 = vsel %vm342, %v336, %v345
    %v348 = vsel %vm343, %v339, %v346
    %349 = vmatprep.subr.mxu0 0.0
    %350 = vmatpush1.msra.mxu0 %v248
    %351 = vmatprep.subr.mxu0 0.0
    %352 = vmatpush1.msra.mxu0 %v251
    %353 = vmatprep.subr.mxu0 0.0
    %354 = vmatpush1.msra.mxu0 0.0
    %355 = vmatprep.subr.mxu0 0.0
    %356 = vmatpush1.msra.mxu0 0.0
    %357 = vmatprep.subr.mxu0 0.0
    %358 = vmatpush1.msra.mxu0 0.0
    %359 = vmatprep.subr.mxu0 0.0
    %360 = vmatpush1.msra.mxu0 0.0
    %361 = vmatprep.subr.mxu0 0.0
    %362 = vmatpush1.msra.mxu0 0.0
    %363 = vmatprep.subr.mxu0 0.0
    %364 = vmatpush1.msra.mxu0 0.0
    %365 = vmatprep.subr.mxu0 0.0
    %366 = vmatpush1.msra.mxu0 0.0
    %367 = vmatprep.subr.mxu0 0.0
    %368 = vmatpush1.msra.mxu0 0.0
    %369 = vmatprep.subr.mxu0 0.0
    %370 = vmatpush1.msra.mxu0 0.0
    %371 = vmatprep.subr.mxu0 0.0
    %372 = vmatpush1.msra.mxu0 0.0
    %373 = vmatprep.subr.mxu0 0.0
    %374 = vmatpush1.msra.mxu0 0.0
    %375 = vmatprep.subr.mxu0 0.0
    %376 = vmatpush1.msra.mxu0 0.0
    %377 = vmatprep.subr.mxu0 0.0
    %378 = vmatpush1.msra.mxu0 0.0
    %379 = vmatprep.subr.mxu0 0.0
    %380 = vmatpush1.msra.mxu0 0.0
    %381 = vmatprep.subr.mxu0 0.0
    %382 = vmatpush1.msra.mxu0 0.0
    %383 = vmatprep.subr.mxu0 0.0
    %384 = vmatpush1.msra.mxu0 0.0
    %385 = vmatprep.subr.mxu0 0.0
    %386 = vmatpush1.msra.mxu0 0.0
    %387 = vmatprep.subr.mxu0 0.0
    %388 = vmatpush1.msra.mxu0 0.0
    %389 = vmatprep.subr.mxu0 0.0
    %390 = vmatpush1.msra.mxu0 0.0
    %391 = vmatprep.subr.mxu0 0.0
    %392 = vmatpush1.msra.mxu0 0.0
    %393 = vmatprep.subr.mxu0 0.0
    %394 = vmatpush1.msra.mxu0 0.0
    %395 = vmatprep.subr.mxu0 0.0
    %396 = vmatpush1.msra.mxu0 0.0
    %397 = vmatprep.subr.mxu0 0.0
    %398 = vmatpush1.msra.mxu0 0.0
    %399 = vmatprep.subr.mxu0 0.0
    %400 = vmatpush1.msra.mxu0 0.0
    %401 = vmatprep.subr.mxu0 0.0
    %402 = vmatpush1.msra.mxu0 0.0
    %403 = vmatprep.subr.mxu0 0.0
    %404 = vmatpush1.msra.mxu0 0.0
    %405 = vmatprep.subr.mxu0 0.0
    %406 = vmatpush1.msra.mxu0 0.0
    %407 = vmatprep.subr.mxu0 0.0
    %408 = vmatpush1.msra.mxu0 0.0
    %409 = vmatprep.subr.mxu0 0.0
    %410 = vmatpush1.msra.mxu0 0.0
    %411 = vmatprep.subr.mxu0 0.0
    %412 = vmatpush1.msra.mxu0 0.0
    %413 = vmatprep.mubr.bf16.mxu0 0
    %414 = vmatmul.mubr.bf16.gmra.mrb[0].mxu0 %v267
    %v415 = vpop.f32.mrb[0].mxu0
    %v416 = vadd.f32 %v258, %v415
    %v417 = vpop.f32.mrb[0].mxu0
    %v418 = vpop.f32.mrb[0].mxu0
    %v419 = vadd.f32 %v258, %v418
    %v420 = vpop.f32.mrb[0].mxu0
    %421 = vdwg.mxu0
    %vm422 = vcmp.gt.f32.partialorder %v416, 0.0
    %vm423 = vcmp.gt.f32.partialorder %v419, 0.0
    %v424 = vmul.f32 %v344, %v416
    %v425 = vmul.f32 %v344, %v419
    %v426 = vsel %vm422, %v416, %v424
    %v427 = vsel %vm423, %v419, %v425
    %428 = vst.msk [vmem:[#allocation13] sm:$0xff] %vm160, %v347
    %429 = vst.msk [vmem:[#allocation13 + $0x8] sm:$0xff] %vm160, %v348
    %v431 = vsel %vm265, %v142, 0
    %433 = vmatprep.subr.mxu0 0.0
    %434 = vmatpush1.msra.mxu0 %v347
    %435 = vmatprep.subr.mxu0 0.0
    %436 = vmatpush1.msra.mxu0 %v348
    %437 = vmatprep.subr.mxu0 0.0
    %438 = vmatpush1.msra.mxu0 0.0
    %439 = vmatprep.subr.mxu0 0.0
    %440 = vmatpush1.msra.mxu0 0.0
    %441 = vmatprep.subr.mxu0 0.0
    %442 = vmatpush1.msra.mxu0 0.0
    %443 = vmatprep.subr.mxu0 0.0
    %444 = vmatpush1.msra.mxu0 0.0
    %445 = vmatprep.subr.mxu0 0.0
    %446 = vmatpush1.msra.mxu0 0.0
    %447 = vmatprep.subr.mxu0 0.0
    %448 = vmatpush1.msra.mxu0 0.0
    %449 = vmatprep.subr.mxu0 0.0
    %450 = vmatpush1.msra.mxu0 0.0
    %451 = vmatprep.subr.mxu0 0.0
    %452 = vmatpush1.msra.mxu0 0.0
    %453 = vmatprep.subr.mxu0 0.0
    %454 = vmatpush1.msra.mxu0 0.0
    %455 = vmatprep.subr.mxu0 0.0
    %456 = vmatpush1.msra.mxu0 0.0
    %457 = vmatprep.subr.mxu0 0.0
    %458 = vmatpush1.msra.mxu0 0.0
    %459 = vmatprep.subr.mxu0 0.0
    %460 = vmatpush1.msra.mxu0 0.0
    %461 = vmatprep.subr.mxu0 0.0
    %462 = vmatpush1.msra.mxu0 0.0
    %463 = vmatprep.subr.mxu0 0.0
    %464 = vmatpush1.msra.mxu0 0.0
    %465 = vmatprep.subr.mxu0 0.0
    %466 = vmatpush1.msra.mxu0 0.0
    %467 = vmatprep.subr.mxu0 0.0
    %468 = vmatpush1.msra.mxu0 0.0
    %469 = vmatprep.subr.mxu0 0.0
    %470 = vmatpush1.msra.mxu0 0.0
    %471 = vmatprep.subr.mxu0 0.0
    %472 = vmatpush1.msra.mxu0 0.0
    %473 = vmatprep.subr.mxu0 0.0
    %474 = vmatpush1.msra.mxu0 0.0
    %475 = vmatprep.subr.mxu0 0.0
    %476 = vmatpush1.msra.mxu0 0.0
    %477 = vmatprep.subr.mxu0 0.0
    %478 = vmatpush1.msra.mxu0 0.0
    %479 = vmatprep.subr.mxu0 0.0
    %480 = vmatpush1.msra.mxu0 0.0
    %481 = vmatprep.subr.mxu0 0.0
    %482 = vmatpush1.msra.mxu0 0.0
    %483 = vmatprep.subr.mxu0 0.0
    %484 = vmatpush1.msra.mxu0 0.0
    %485 = vmatprep.subr.mxu0 0.0
    %486 = vmatpush1.msra.mxu0 0.0
    %487 = vmatprep.subr.mxu0 0.0
    %488 = vmatpush1.msra.mxu0 0.0
    %489 = vmatprep.subr.mxu0 0.0
    %490 = vmatpush1.msra.mxu0 0.0
    %491 = vmatprep.subr.mxu0 0.0
    %492 = vmatpush1.msra.mxu0 0.0
    %493 = vmatprep.subr.mxu0 0.0
    %494 = vmatpush1.msra.mxu0 0.0
    %495 = vmatprep.subr.mxu0 0.0
    %496 = vmatpush1.msra.mxu0 0.0
    %497 = vmatprep.mubr.f32.mxu0 0.0
    %498 = vmatmul.mubr.f32.gmra.mrb[0].mxu0 %v431
    %v499 = vpop.f32.mrb[0].mxu0
    %v500 = vadd.f32 0.0, %v499
    %v501 = vpop.f32.mrb[0].mxu0
    %502 = vdwg.mxu0
    %v503 = vxor.u32 %v500, 2147483648
    %v504 = vmul.f32 %v503, 1.442695
    %v505 = vpow.pop %v504
    %v506 = vadd.f32 %v505, 1.0
    %v507 = vrcp.pop %v506
    %v508 = vmul.f32 1.0, %v507
    %v513 = vunpack.c.l.b16 %v128
    %v514 = vunpack.c.l.b16 %v129
    %v515 = vunpack.c.l.b16 %v130
    %v516 = vunpack.c.l.b16 %v131
    %v517 = vpack.c.b16 %v514, %v513
    %v518 = vpack.c.b16 %v516, %v515
    %v522 = vsel %vm160, %v508, 0
    %524 = vmatprep.subr.bf16.mxu0 0
    %525 = vmatpush1.bf16.msra.mxu0 %v517
    %526 = vmatprep.subr.bf16.mxu0 0
    %527 = vmatpush1.bf16.msra.mxu0 %v518
    %528 = vmatprep.subr.bf16.mxu0 0
    %529 = vmatpush1.bf16.msra.mxu0 0
    %530 = vmatprep.subr.bf16.mxu0 0
    %531 = vmatpush1.bf16.msra.mxu0 0
    %532 = vmatprep.subr.bf16.mxu0 0
    %533 = vmatpush1.bf16.msra.mxu0 0
    %534 = vmatprep.subr.bf16.mxu0 0
    %535 = vmatpush1.bf16.msra.mxu0 0
    %536 = vmatprep.subr.bf16.mxu0 0
    %537 = vmatpush1.bf16.msra.mxu0 0
    %538 = vmatprep.subr.bf16.mxu0 0
    %539 = vmatpush1.bf16.msra.mxu0 0
    %540 = vmatprep.subr.bf16.mxu0 0
    %541 = vmatpush1.bf16.msra.mxu0 0
    %542 = vmatprep.subr.bf16.mxu0 0
    %543 = vmatpush1.bf16.msra.mxu0 0
    %544 = vmatprep.subr.bf16.mxu0 0
    %545 = vmatpush1.bf16.msra.mxu0 0
    %546 = vmatprep.subr.bf16.mxu0 0
    %547 = vmatpush1.bf16.msra.mxu0 0
    %548 = vmatprep.subr.bf16.mxu0 0
    %549 = vmatpush1.bf16.msra.mxu0 0
    %550 = vmatprep.subr.bf16.mxu0 0
    %551 = vmatpush1.bf16.msra.mxu0 0
    %552 = vmatprep.subr.bf16.mxu0 0
    %553 = vmatpush1.bf16.msra.mxu0 0
    %554 = vmatprep.subr.bf16.mxu0 0
    %555 = vmatpush1.bf16.msra.mxu0 0
    %556 = vmatprep.mubr.f32.mxu0 0.0
    %557 = vmatmul.mubr.f32.gmra.mrb[0].mxu0 %v522
    %v558 = vpop.f32.mrb[0].mxu0
    %v559 = vadd.f32 0.0, %v558
    %v560 = vpop.f32.mrb[0].mxu0
    %561 = vdwg.mxu0
    %v566 = vunpack.c.l.b16 %v132
    %v567 = vunpack.c.l.b16 %v133
    %v568 = vunpack.c.l.b16 %v134
    %v569 = vunpack.c.l.b16 %v135
    %v570 = vpack.c.b16 %v567, %v566
    %v571 = vpack.c.b16 %v569, %v568
    %574 = vmatprep.subr.bf16.mxu0 0
    %575 = vmatpush1.bf16.msra.mxu0 %v570
    %576 = vmatprep.subr.bf16.mxu0 0
    %577 = vmatpush1.bf16.msra.mxu0 %v571
    %578 = vmatprep.subr.bf16.mxu0 0
    %579 = vmatpush1.bf16.msra.mxu0 0
    %580 = vmatprep.subr.bf16.mxu0 0
    %581 = vmatpush1.bf16.msra.mxu0 0
    %582 = vmatprep.subr.bf16.mxu0 0
    %583 = vmatpush1.bf16.msra.mxu0 0
    %584 = vmatprep.subr.bf16.mxu0 0
    %585 = vmatpush1.bf16.msra.mxu0 0
    %586 = vmatprep.subr.bf16.mxu0 0
    %587 = vmatpush1.bf16.msra.mxu0 0
    %588 = vmatprep.subr.bf16.mxu0 0
    %589 = vmatpush1.bf16.msra.mxu0 0
    %590 = vmatprep.subr.bf16.mxu0 0
    %591 = vmatpush1.bf16.msra.mxu0 0
    %592 = vmatprep.subr.bf16.mxu0 0
    %593 = vmatpush1.bf16.msra.mxu0 0
    %594 = vmatprep.subr.bf16.mxu0 0
    %595 = vmatpush1.bf16.msra.mxu0 0
    %596 = vmatprep.subr.bf16.mxu0 0
    %597 = vmatpush1.bf16.msra.mxu0 0
    %598 = vmatprep.subr.bf16.mxu0 0
    %599 = vmatpush1.bf16.msra.mxu0 0
    %600 = vmatprep.subr.bf16.mxu0 0
    %601 = vmatpush1.bf16.msra.mxu0 0
    %602 = vmatprep.subr.bf16.mxu0 0
    %603 = vmatpush1.bf16.msra.mxu0 0
    %604 = vmatprep.subr.bf16.mxu0 0
    %605 = vmatpush1.bf16.msra.mxu0 0
    %606 = vmatprep.mubr.f32.mxu0 0.0
    %607 = vmatmul.mubr.f32.gmra.mrb[0].mxu0 %v522
    %v608 = vpop.f32.mrb[0].mxu0
    %v609 = vadd.f32 0.0, %v608
    %v610 = vpop.f32.mrb[0].mxu0
    %611 = vdwg.mxu0
    %v612 = vstv %s120
    %v614 = vsel %vm160, %v559, 0
    %v617 = vsel %vm160, %v347, 0
    %v620 = vsel %vm160, %v348, 0
    %622 = vmatprep.subr.mxu0 0.0
    %623 = vmatpush1.xpose.msra.mxu0 %v617
    %624 = vmatprep.subr.mxu0 0.0
    %625 = vmatpush1.xpose.msra.mxu0 %v620
    %626 = vmatprep.subr.mxu0 0.0
    %627 = vmatpush1.xpose.msra.mxu0 0.0
    %628 = vmatprep.subr.mxu0 0.0
    %629 = vmatpush1.xpose.msra.mxu0 0.0
    %630 = vmatprep.subr.mxu0 0.0
    %631 = vmatpush1.xpose.msra.mxu0 0.0
    %632 = vmatprep.subr.mxu0 0.0
    %633 = vmatpush1.xpose.msra.mxu0 0.0
    %634 = vmatprep.subr.mxu0 0.0
    %635 = vmatpush1.xpose.msra.mxu0 0.0
    %636 = vmatprep.subr.mxu0 0.0
    %637 = vmatpush1.xpose.msra.mxu0 0.0
    %638 = vmatprep.subr.mxu0 0.0
    %639 = vmatpush1.xpose.msra.mxu0 0.0
    %640 = vmatprep.subr.mxu0 0.0
    %641 = vmatpush1.xpose.msra.mxu0 0.0
    %642 = vmatprep.subr.mxu0 0.0
    %643 = vmatpush1.xpose.msra.mxu0 0.0
    %644 = vmatprep.subr.mxu0 0.0
    %645 = vmatpush1.xpose.msra.mxu0 0.0
    %646 = vmatprep.subr.mxu0 0.0
    %647 = vmatpush1.xpose.msra.mxu0 0.0
    %648 = vmatprep.subr.mxu0 0.0
    %649 = vmatpush1.xpose.msra.mxu0 0.0
    %650 = vmatprep.subr.mxu0 0.0
    %651 = vmatpush1.xpose.msra.mxu0 0.0
    %652 = vmatprep.subr.mxu0 0.0
    %653 = vmatpush1.xpose.msra.mxu0 0.0
    %654 = vmatprep.subr.mxu0 0.0
    %655 = vmatpush1.xpose.msra.mxu0 0.0
    %656 = vmatprep.subr.mxu0 0.0
    %657 = vmatpush1.xpose.msra.mxu0 0.0
    %658 = vmatprep.subr.mxu0 0.0
    %659 = vmatpush1.xpose.msra.mxu0 0.0
    %660 = vmatprep.subr.mxu0 0.0
    %661 = vmatpush1.xpose.msra.mxu0 0.0
    %662 = vmatprep.subr.mxu0 0.0
    %663 = vmatpush1.xpose.msra.mxu0 0.0
    %664 = vmatprep.subr.mxu0 0.0
    %665 = vmatpush1.xpose.msra.mxu0 0.0
    %666 = vmatprep.subr.mxu0 0.0
    %667 = vmatpush1.xpose.msra.mxu0 0.0
    %668 = vmatprep.subr.mxu0 0.0
    %669 = vmatpush1.xpose.msra.mxu0 0.0
    %670 = vmatprep.subr.mxu0 0.0
    %671 = vmatpush1.xpose.msra.mxu0 0.0
    %672 = vmatprep.subr.mxu0 0.0
    %673 = vmatpush1.xpose.msra.mxu0 0.0
    %674 = vmatprep.subr.mxu0 0.0
    %675 = vmatpush1.xpose.msra.mxu0 0.0
    %676 = vmatprep.subr.mxu0 0.0
    %677 = vmatpush1.xpose.msra.mxu0 0.0
    %678 = vmatprep.subr.mxu0 0.0
    %679 = vmatpush1.xpose.msra.mxu0 0.0
    %680 = vmatprep.subr.mxu0 0.0
    %681 = vmatpush1.xpose.msra.mxu0 0.0
    %682 = vmatprep.subr.mxu0 0.0
    %683 = vmatpush1.xpose.msra.mxu0 0.0
    %684 = vmatprep.subr.mxu0 0.0
    %685 = vmatpush1.xpose.msra.mxu0 0.0
    %686 = vmatprep.mubr.f32.mxu0 0.0
    %687 = vmatmul.mubr.f32.gmra.mrb[0].mxu0 %v614
    %v688 = vpop.f32.mrb[0].mxu0
    %v689 = vadd.f32 %v612, %v688
    %v690 = vpop.f32.mrb[0].mxu0
    %691 = vdwg.mxu0
    %vm692 = vcmask 122880
    %693 = vst.msk [vmem:[#allocation14] sm:$0x1] %vm692, %v689
    %v695 = vsel %vm160, %v426, 0
    %v698 = vsel %vm160, %v427, 0
    %700 = vmatprep.subr.mxu0 0.0
    %701 = vmatpush1.xpose.msra.mxu0 %v695
    %702 = vmatprep.subr.mxu0 0.0
    %703 = vmatpush1.xpose.msra.mxu0 %v698
    %704 = vmatprep.subr.mxu0 0.0
    %705 = vmatpush1.xpose.msra.mxu0 0.0
    %706 = vmatprep.subr.mxu0 0.0
    %707 = vmatpush1.xpose.msra.mxu0 0.0
    %708 = vmatprep.subr.mxu0 0.0
    %709 = vmatpush1.xpose.msra.mxu0 0.0
    %710 = vmatprep.subr.mxu0 0.0
    %711 = vmatpush1.xpose.msra.mxu0 0.0
    %712 = vmatprep.subr.mxu0 0.0
    %713 = vmatpush1.xpose.msra.mxu0 0.0
    %714 = vmatprep.subr.mxu0 0.0
    %715 = vmatpush1.xpose.msra.mxu0 0.0
    %716 = vmatprep.subr.mxu0 0.0
    %717 = vmatpush1.xpose.msra.mxu0 0.0
    %718 = vmatprep.subr.mxu0 0.0
    %719 = vmatpush1.xpose.msra.mxu0 0.0
    %720 = vmatprep.subr.mxu0 0.0
    %721 = vmatpush1.xpose.msra.mxu0 0.0
    %722 = vmatprep.subr.mxu0 0.0
    %723 = vmatpush1.xpose.msra.mxu0 0.0
    %724 = vmatprep.subr.mxu0 0.0
    %725 = vmatpush1.xpose.msra.mxu0 0.0
    %726 = vmatprep.subr.mxu0 0.0
    %727 = vmatpush1.xpose.msra.mxu0 0.0
    %728 = vmatprep.subr.mxu0 0.0
    %729 = vmatpush1.xpose.msra.mxu0 0.0
    %730 = vmatprep.subr.mxu0 0.0
    %731 = vmatpush1.xpose.msra.mxu0 0.0
    %732 = vmatprep.subr.mxu0 0.0
    %733 = vmatpush1.xpose.msra.mxu0 0.0
    %734 = vmatprep.subr.mxu0 0.0
    %735 = vmatpush1.xpose.msra.mxu0 0.0
    %736 = vmatprep.subr.mxu0 0.0
    %737 = vmatpush1.xpose.msra.mxu0 0.0
    %738 = vmatprep.subr.mxu0 0.0
    %739 = vmatpush1.xpose.msra.mxu0 0.0
    %740 = vmatprep.subr.mxu0 0.0
    %741 = vmatpush1.xpose.msra.mxu0 0.0
    %742 = vmatprep.subr.mxu0 0.0
    %743 = vmatpush1.xpose.msra.mxu0 0.0
    %744 = vmatprep.subr.mxu0 0.0
    %745 = vmatpush1.xpose.msra.mxu0 0.0
    %746 = vmatprep.subr.mxu0 0.0
    %747 = vmatpush1.xpose.msra.mxu0 0.0
    %748 = vmatprep.subr.mxu0 0.0
    %749 = vmatpush1.xpose.msra.mxu0 0.0
    %750 = vmatprep.subr.mxu0 0.0
    %751 = vmatpush1.xpose.msra.mxu0 0.0
    %752 = vmatprep.subr.mxu0 0.0
    %753 = vmatpush1.xpose.msra.mxu0 0.0
    %754 = vmatprep.subr.mxu0 0.0
    %755 = vmatpush1.xpose.msra.mxu0 0.0
    %756 = vmatprep.subr.mxu0 0.0
    %757 = vmatpush1.xpose.msra.mxu0 0.0
    %758 = vmatprep.subr.mxu0 0.0
    %759 = vmatpush1.xpose.msra.mxu0 0.0
    %760 = vmatprep.subr.mxu0 0.0
    %761 = vmatpush1.xpose.msra.mxu0 0.0
    %762 = vmatprep.subr.mxu0 0.0
    %763 = vmatpush1.xpose.msra.mxu0 0.0
    %764 = vmatprep.mubr.f32.mxu0 0.0
    %765 = vmatmul.mubr.f32.gmra.mrb[0].mxu0 %v614
    %v766 = vpop.f32.mrb[0].mxu0
    %v767 = vadd.f32 %v612, %v766
    %v768 = vpop.f32.mrb[0].mxu0
    %769 = vdwg.mxu0
    %770 = vst.msk [vmem:[#allocation14 + $0x1] sm:$0x1] %vm692, %v767
    %771 = vrot.lane.b32.xlu0 %v347, 32
    %v772 = vpop.permute.xlu0 %771
    %773 = vrot.lane.b32.xlu0 %v348, 32
    %v774 = vpop.permute.xlu0 %773
    %v777 = vmul.f32 %v199, %v772
    %v778 = vmul.f32 %v202, %v774
    %v779 = vstv %s121
    %782 = vrot.lane.b32.xlu0 %v777, 96
    %v783 = vpop.permute.xlu0 %782
    %784 = vrot.lane.b32.xlu0 %v778, 96
    %v785 = vpop.permute.xlu0 %784
    %v787 = vsel %vm160, 1.0, 0
    %v789 = vsel %vm160, %v783, 0
    %v791 = vsel %vm160, %v785, 0
    %793 = vmatprep.subr.mxu0 0.0
    %794 = vmatpush1.xpose.msra.mxu0 %v789
    %795 = vmatprep.subr.mxu0 0.0
    %796 = vmatpush1.xpose.msra.mxu0 %v791
    %797 = vmatprep.subr.mxu0 0.0
    %798 = vmatpush1.xpose.msra.mxu0 0.0
    %799 = vmatprep.subr.mxu0 0.0
    %800 = vmatpush1.xpose.msra.mxu0 0.0
    %801 = vmatprep.subr.mxu0 0.0
    %802 = vmatpush1.xpose.msra.mxu0 0.0
    %803 = vmatprep.subr.mxu0 0.0
    %804 = vmatpush1.xpose.msra.mxu0 0.0
    %805 = vmatprep.subr.mxu0 0.0
    %806 = vmatpush1.xpose.msra.mxu0 0.0
    %807 = vmatprep.subr.mxu0 0.0
    %808 = vmatpush1.xpose.msra.mxu0 0.0
    %809 = vmatprep.subr.mxu0 0.0
    %810 = vmatpush1.xpose.msra.mxu0 0.0
    %811 = vmatprep.subr.mxu0 0.0
    %812 = vmatpush1.xpose.msra.mxu0 0.0
    %813 = vmatprep.subr.mxu0 0.0
    %814 = vmatpush1.xpose.msra.mxu0 0.0
    %815 = vmatprep.subr.mxu0 0.0
    %816 = vmatpush1.xpose.msra.mxu0 0.0
    %817 = vmatprep.subr.mxu0 0.0
    %818 = vmatpush1.xpose.msra.mxu0 0.0
    %819 = vmatprep.subr.mxu0 0.0
    %820 = vmatpush1.xpose.msra.mxu0 0.0
    %821 = vmatprep.subr.mxu0 0.0
    %822 = vmatpush1.xpose.msra.mxu0 0.0
    %823 = vmatprep.subr.mxu0 0.0
    %824 = vmatpush1.xpose.msra.mxu0 0.0
    %825 = vmatprep.subr.mxu0 0.0
    %826 = vmatpush1.xpose.msra.mxu0 0.0
    %827 = vmatprep.subr.mxu0 0.0
    %828 = vmatpush1.xpose.msra.mxu0 0.0
    %829 = vmatprep.subr.mxu0 0.0
    %830 = vmatpush1.xpose.msra.mxu0 0.0
    %831 = vmatprep.subr.mxu0 0.0
    %832 = vmatpush1.xpose.msra.mxu0 0.0
    %833 = vmatprep.subr.mxu0 0.0
    %834 = vmatpush1.xpose.msra.mxu0 0.0
    %835 = vmatprep.subr.mxu0 0.0
    %836 = vmatpush1.xpose.msra.mxu0 0.0
    %837 = vmatprep.subr.mxu0 0.0
    %838 = vmatpush1.xpose.msra.mxu0 0.0
    %839 = vmatprep.subr.mxu0 0.0
    %840 = vmatpush1.xpose.msra.mxu0 0.0
    %841 = vmatprep.subr.mxu0 0.0
    %842 = vmatpush1.xpose.msra.mxu0 0.0
    %843 = vmatprep.subr.mxu0 0.0
    %844 = vmatpush1.xpose.msra.mxu0 0.0
    %845 = vmatprep.subr.mxu0 0.0
    %846 = vmatpush1.xpose.msra.mxu0 0.0
    %847 = vmatprep.subr.mxu0 0.0
    %848 = vmatpush1.xpose.msra.mxu0 0.0
    %849 = vmatprep.subr.mxu0 0.0
    %850 = vmatpush1.xpose.msra.mxu0 0.0
    %851 = vmatprep.subr.mxu0 0.0
    %852 = vmatpush1.xpose.msra.mxu0 0.0
    %853 = vmatprep.subr.mxu0 0.0
    %854 = vmatpush1.xpose.msra.mxu0 0.0
    %855 = vmatprep.subr.mxu0 0.0
    %856 = vmatpush1.xpose.msra.mxu0 0.0
    %857 = vmatprep.mubr.f32.mxu0 0.0
    %858 = vmatmul.mubr.f32.gmra.mrb[0].mxu0 %v787
    %v859 = vpop.f32.mrb[0].mxu0
    %v860 = vadd.f32 %v779, %v859
    %v861 = vpop.f32.mrb[0].mxu0
    %862 = vdwg.mxu0
    %863 = vst.msk [vmem:[#allocation16] sm:$0x1] %vm692, %v860
    %v864 = vmul.f32 %v248, %v772
    %v865 = vmul.f32 %v251, %v774
    %868 = vrot.lane.b32.xlu0 %v864, 96
    %v869 = vpop.permute.xlu0 %868
    %870 = vrot.lane.b32.xlu0 %v865, 96
    %v871 = vpop.permute.xlu0 %870
    %v872 = vsel %vm160, %v869, 0
    %v874 = vsel %vm160, %v871, 0
    %876 = vmatprep.subr.mxu0 0.0
    %877 = vmatpush1.xpose.msra.mxu0 %v872
    %878 = vmatprep.subr.mxu0 0.0
    %879 = vmatpush1.xpose.msra.mxu0 %v874
    %880 = vmatprep.subr.mxu0 0.0
    %881 = vmatpush1.xpose.msra.mxu0 0.0
    %882 = vmatprep.subr.mxu0 0.0
    %883 = vmatpush1.xpose.msra.mxu0 0.0
    %884 = vmatprep.subr.mxu0 0.0
    %885 = vmatpush1.xpose.msra.mxu0 0.0
    %886 = vmatprep.subr.mxu0 0.0
    %887 = vmatpush1.xpose.msra.mxu0 0.0
    %888 = vmatprep.subr.mxu0 0.0
    %889 = vmatpush1.xpose.msra.mxu0 0.0
    %890 = vmatprep.subr.mxu0 0.0
    %891 = vmatpush1.xpose.msra.mxu0 0.0
    %892 = vmatprep.subr.mxu0 0.0
    %893 = vmatpush1.xpose.msra.mxu0 0.0
    %894 = vmatprep.subr.mxu0 0.0
    %895 = vmatpush1.xpose.msra.mxu0 0.0
    %896 = vmatprep.subr.mxu0 0.0
    %897 = vmatpush1.xpose.msra.mxu0 0.0
    %898 = vmatprep.subr.mxu0 0.0
    %899 = vmatpush1.xpose.msra.mxu0 0.0
    %900 = vmatprep.subr.mxu0 0.0
    %901 = vmatpush1.xpose.msra.mxu0 0.0
    %902 = vmatprep.subr.mxu0 0.0
    %903 = vmatpush1.xpose.msra.mxu0 0.0
    %904 = vmatprep.subr.mxu0 0.0
    %905 = vmatpush1.xpose.msra.mxu0 0.0
    %906 = vmatprep.subr.mxu0 0.0
    %907 = vmatpush1.xpose.msra.mxu0 0.0
    %908 = vmatprep.subr.mxu0 0.0
    %909 = vmatpush1.xpose.msra.mxu0 0.0
    %910 = vmatprep.subr.mxu0 0.0
    %911 = vmatpush1.xpose.msra.mxu0 0.0
    %912 = vmatprep.subr.mxu0 0.0
    %913 = vmatpush1.xpose.msra.mxu0 0.0
    %914 = vmatprep.subr.mxu0 0.0
    %915 = vmatpush1.xpose.msra.mxu0 0.0
    %916 = vmatprep.subr.mxu0 0.0
    %917 = vmatpush1.xpose.msra.mxu0 0.0
    %918 = vmatprep.subr.mxu0 0.0
    %919 = vmatpush1.xpose.msra.mxu0 0.0
    %920 = vmatprep.subr.mxu0 0.0
    %921 = vmatpush1.xpose.msra.mxu0 0.0
    %922 = vmatprep.subr.mxu0 0.0
    %923 = vmatpush1.xpose.msra.mxu0 0.0
    %924 = vmatprep.subr.mxu0 0.0
    %925 = vmatpush1.xpose.msra.mxu0 0.0
    %926 = vmatprep.subr.mxu0 0.0
    %927 = vmatpush1.xpose.msra.mxu0 0.0
    %928 = vmatprep.subr.mxu0 0.0
    %929 = vmatpush1.xpose.msra.mxu0 0.0
    %930 = vmatprep.subr.mxu0 0.0
    %931 = vmatpush1.xpose.msra.mxu0 0.0
    %932 = vmatprep.subr.mxu0 0.0
    %933 = vmatpush1.xpose.msra.mxu0 0.0
    %934 = vmatprep.subr.mxu0 0.0
    %935 = vmatpush1.xpose.msra.mxu0 0.0
    %936 = vmatprep.subr.mxu0 0.0
    %937 = vmatpush1.xpose.msra.mxu0 0.0
    %938 = vmatprep.subr.mxu0 0.0
    %939 = vmatpush1.xpose.msra.mxu0 0.0
    %940 = vmatprep.mubr.f32.mxu0 0.0
    %941 = vmatmul.mubr.f32.gmra.mrb[0].mxu0 %v787
    %v942 = vpop.f32.mrb[0].mxu0
    %v943 = vadd.f32 %v779, %v942
    %v944 = vpop.f32.mrb[0].mxu0
    %945 = vdwg.mxu0
    %946 = vst.msk [vmem:[#allocation16 + $0x1] sm:$0x1] %vm692, %v943
    %v947 = vunpack.c.l.bf16 %v136
    %v948 = vunpack.c.l.bf16 %v137
    %v949 = vstv %s122
    %v951 = vsel %vm160, %v609, 0
    %v954 = vsel %vm160, %v947, 0
    %v957 = vsel %vm160, %v948, 0
    %959 = vmatprep.subr.mxu0 0.0
    %960 = vmatpush1.xpose.msra.mxu0 %v954
    %961 = vmatprep.subr.mxu0 0.0
    %962 = vmatpush1.xpose.msra.mxu0 %v957
    %963 = vmatprep.subr.mxu0 0.0
    %964 = vmatpush1.xpose.msra.mxu0 0.0
    %965 = vmatprep.subr.mxu0 0.0
    %966 = vmatpush1.xpose.msra.mxu0 0.0
    %967 = vmatprep.subr.mxu0 0.0
    %968 = vmatpush1.xpose.msra.mxu0 0.0
    %969 = vmatprep.subr.mxu0 0.0
    %970 = vmatpush1.xpose.msra.mxu0 0.0
    %971 = vmatprep.subr.mxu0 0.0
    %972 = vmatpush1.xpose.msra.mxu0 0.0
    %973 = vmatprep.subr.mxu0 0.0
    %974 = vmatpush1.xpose.msra.mxu0 0.0
    %975 = vmatprep.subr.mxu0 0.0
    %976 = vmatpush1.xpose.msra.mxu0 0.0
    %977 = vmatprep.subr.mxu0 0.0
    %978 = vmatpush1.xpose.msra.mxu0 0.0
    %979 = vmatprep.subr.mxu0 0.0
    %980 = vmatpush1.xpose.msra.mxu0 0.0
    %981 = vmatprep.subr.mxu0 0.0
    %982 = vmatpush1.xpose.msra.mxu0 0.0
    %983 = vmatprep.subr.mxu0 0.0
    %984 = vmatpush1.xpose.msra.mxu0 0.0
    %985 = vmatprep.subr.mxu0 0.0
    %986 = vmatpush1.xpose.msra.mxu0 0.0
    %987 = vmatprep.subr.mxu0 0.0
    %988 = vmatpush1.xpose.msra.mxu0 0.0
    %989 = vmatprep.subr.mxu0 0.0
    %990 = vmatpush1.xpose.msra.mxu0 0.0
    %991 = vmatprep.subr.mxu0 0.0
    %992 = vmatpush1.xpose.msra.mxu0 0.0
    %993 = vmatprep.subr.mxu0 0.0
    %994 = vmatpush1.xpose.msra.mxu0 0.0
    %995 = vmatprep.subr.mxu0 0.0
    %996 = vmatpush1.xpose.msra.mxu0 0.0
    %997 = vmatprep.subr.mxu0 0.0
    %998 = vmatpush1.xpose.msra.mxu0 0.0
    %999 = vmatprep.subr.mxu0 0.0
    %1000 = vmatpush1.xpose.msra.mxu0 0.0
    %1001 = vmatprep.subr.mxu0 0.0
    %1002 = vmatpush1.xpose.msra.mxu0 0.0
    %1003 = vmatprep.subr.mxu0 0.0
    %1004 = vmatpush1.xpose.msra.mxu0 0.0
    %1005 = vmatprep.subr.mxu0 0.0
    %1006 = vmatpush1.xpose.msra.mxu0 0.0
    %1007 = vmatprep.subr.mxu0 0.0
    %1008 = vmatpush1.xpose.msra.mxu0 0.0
    %1009 = vmatprep.subr.mxu0 0.0
    %1010 = vmatpush1.xpose.msra.mxu0 0.0
    %1011 = vmatprep.subr.mxu0 0.0
    %1012 = vmatpush1.xpose.msra.mxu0 0.0
    %1013 = vmatprep.subr.mxu0 0.0
    %1014 = vmatpush1.xpose.msra.mxu0 0.0
    %1015 = vmatprep.subr.mxu0 0.0
    %1016 = vmatpush1.xpose.msra.mxu0 0.0
    %1017 = vmatprep.subr.mxu0 0.0
    %1018 = vmatpush1.xpose.msra.mxu0 0.0
    %1019 = vmatprep.subr.mxu0 0.0
    %1020 = vmatpush1.xpose.msra.mxu0 0.0
    %1021 = vmatprep.subr.mxu0 0.0
    %1022 = vmatpush1.xpose.msra.mxu0 0.0
    %1023 = vmatprep.mubr.f32.mxu0 0.0
    %1024 = vmatmul.mubr.f32.gmra.mrb[0].mxu0 %v951
    %v1025 = vpop.f32.mrb[0].mxu0
    %v1026 = vadd.f32 %v949, %v1025
    %v1027 = vpop.f32.mrb[0].mxu0
    %1028 = vdwg.mxu0
    %1029 = vst.msk [vmem:[#allocation17] sm:$0x1] %vm692, %v1026
    %v1030 = vunpack.c.l.bf16 %v138
    %v1031 = vunpack.c.l.bf16 %v139
    %v1033 = vsel %vm160, %v1030, 0
    %v1036 = vsel %vm160, %v1031, 0
    %1038 = vmatprep.subr.mxu0 0.0
    %1039 = vmatpush1.xpose.msra.mxu0 %v1033
    %1040 = vmatprep.subr.mxu0 0.0
    %1041 = vmatpush1.xpose.msra.mxu0 %v1036
    %1042 = vmatprep.subr.mxu0 0.0
    %1043 = vmatpush1.xpose.msra.mxu0 0.0
    %1044 = vmatprep.subr.mxu0 0.0
    %1045 = vmatpush1.xpose.msra.mxu0 0.0
    %1046 = vmatprep.subr.mxu0 0.0
    %1047 = vmatpush1.xpose.msra.mxu0 0.0
    %1048 = vmatprep.subr.mxu0 0.0
    %1049 = vmatpush1.xpose.msra.mxu0 0.0
    %1050 = vmatprep.subr.mxu0 0.0
    %1051 = vmatpush1.xpose.msra.mxu0 0.0
    %1052 = vmatprep.subr.mxu0 0.0
    %1053 = vmatpush1.xpose.msra.mxu0 0.0
    %1054 = vmatprep.subr.mxu0 0.0
    %1055 = vmatpush1.xpose.msra.mxu0 0.0
    %1056 = vmatprep.subr.mxu0 0.0
    %1057 = vmatpush1.xpose.msra.mxu0 0.0
    %1058 = vmatprep.subr.mxu0 0.0
    %1059 = vmatpush1.xpose.msra.mxu0 0.0
    %1060 = vmatprep.subr.mxu0 0.0
    %1061 = vmatpush1.xpose.msra.mxu0 0.0
    %1062 = vmatprep.subr.mxu0 0.0
    %1063 = vmatpush1.xpose.msra.mxu0 0.0
    %1064 = vmatprep.subr.mxu0 0.0
    %1065 = vmatpush1.xpose.msra.mxu0 0.0
    %1066 = vmatprep.subr.mxu0 0.0
    %1067 = vmatpush1.xpose.msra.mxu0 0.0
    %1068 = vmatprep.subr.mxu0 0.0
    %1069 = vmatpush1.xpose.msra.mxu0 0.0
    %1070 = vmatprep.subr.mxu0 0.0
    %1071 = vmatpush1.xpose.msra.mxu0 0.0
    %1072 = vmatprep.subr.mxu0 0.0
    %1073 = vmatpush1.xpose.msra.mxu0 0.0
    %1074 = vmatprep.subr.mxu0 0.0
    %1075 = vmatpush1.xpose.msra.mxu0 0.0
    %1076 = vmatprep.subr.mxu0 0.0
    %1077 = vmatpush1.xpose.msra.mxu0 0.0
    %1078 = vmatprep.subr.mxu0 0.0
    %1079 = vmatpush1.xpose.msra.mxu0 0.0
    %1080 = vmatprep.subr.mxu0 0.0
    %1081 = vmatpush1.xpose.msra.mxu0 0.0
    %1082 = vmatprep.subr.mxu0 0.0
    %1083 = vmatpush1.xpose.msra.mxu0 0.0
    %1084 = vmatprep.subr.mxu0 0.0
    %1085 = vmatpush1.xpose.msra.mxu0 0.0
    %1086 = vmatprep.subr.mxu0 0.0
    %1087 = vmatpush1.xpose.msra.mxu0 0.0
    %1088 = vmatprep.subr.mxu0 0.0
    %1089 = vmatpush1.xpose.msra.mxu0 0.0
    %1090 = vmatprep.subr.mxu0 0.0
    %1091 = vmatpush1.xpose.msra.mxu0 0.0
    %1092 = vmatprep.subr.mxu0 0.0
    %1093 = vmatpush1.xpose.msra.mxu0 0.0
    %1094 = vmatprep.subr.mxu0 0.0
    %1095 = vmatpush1.xpose.msra.mxu0 0.0
    %1096 = vmatprep.subr.mxu0 0.0
    %1097 = vmatpush1.xpose.msra.mxu0 0.0
    %1098 = vmatprep.subr.mxu0 0.0
    %1099 = vmatpush1.xpose.msra.mxu0 0.0
    %1100 = vmatprep.subr.mxu0 0.0
    %1101 = vmatpush1.xpose.msra.mxu0 0.0
    %1102 = vmatprep.mubr.f32.mxu0 0.0
    %1103 = vmatmul.mubr.f32.gmra.mrb[0].mxu0 %v951
    %v1104 = vpop.f32.mrb[0].mxu0
    %v1105 = vadd.f32 %v949, %v1104
    %v1106 = vpop.f32.mrb[0].mxu0
    %1107 = vdwg.mxu0
    %1108 = vst.msk [vmem:[#allocation17 + $0x1] sm:$0x1] %vm692, %v1105
    %s1109 = scalar_lea.vmem [#allocation6], 8
    %v1110 = vld [vmem:[%s1109] sm:$0xf]
    %v1111 = vld [vmem:[%s1109 + $0x4] sm:$0xf]
    %s1112 = scalar_lea.vmem [#allocation7], 8
    %v1113 = vld [vmem:[%s1112] sm:$0xf]
    %v1114 = vld [vmem:[%s1112 + $0x4] sm:$0xf]
    %s1115 = scalar_lea.vmem [#allocation9], 8
    %v1116 = vld [vmem:[%s1115] sm:$0xf]
    %v1117 = vld [vmem:[%s1115 + $0x4] sm:$0xf]
    %s1118 = scalar_lea.vmem %s4, 1
    %v1119 = vld [vmem:[%s1118] sm:$0x1]
    %v1122 = vunpack.c.l.b16 %v1110
    %v1123 = vunpack.c.l.b16 %v1111
    %v1124 = vpack.c.b16 %v1123, %v1122
    %v1126 = vsel %vm160, %v1124, 0
    %1128 = vmatprep.subr.bf16.mxu0 0
    %1129 = vmatpush1.bf16.msra.mxu0 %v156
    %1130 = vmatprep.subr.bf16.mxu0 0
    %1131 = vmatpush1.bf16.msra.mxu0 %v157
    %1132 = vmatprep.subr.bf16.mxu0 0
    %1133 = vmatpush1.bf16.msra.mxu0 0
    %1134 = vmatprep.subr.bf16.mxu0 0
    %1135 = vmatpush1.bf16.msra.mxu0 0
    %1136 = vmatprep.subr.bf16.mxu0 0
    %1137 = vmatpush1.bf16.msra.mxu0 0
    %1138 = vmatprep.subr.bf16.mxu0 0
    %1139 = vmatpush1.bf16.msra.mxu0 0
    %1140 = vmatprep.subr.bf16.mxu0 0
    %1141 = vmatpush1.bf16.msra.mxu0 0
    %1142 = vmatprep.subr.bf16.mxu0 0
    %1143 = vmatpush1.bf16.msra.mxu0 0
    %1144 = vmatprep.subr.bf16.mxu0 0
    %1145 = vmatpush1.bf16.msra.mxu0 0
    %1146 = vmatprep.subr.bf16.mxu0 0
    %1147 = vmatpush1.bf16.msra.mxu0 0
    %1148 = vmatprep.subr.bf16.mxu0 0
    %1149 = vmatpush1.bf16.msra.mxu0 0
    %1150 = vmatprep.subr.bf16.mxu0 0
    %1151 = vmatpush1.bf16.msra.mxu0 0
    %1152 = vmatprep.subr.bf16.mxu0 0
    %1153 = vmatpush1.bf16.msra.mxu0 0
    %1154 = vmatprep.subr.bf16.mxu0 0
    %1155 = vmatpush1.bf16.msra.mxu0 0
    %1156 = vmatprep.subr.bf16.mxu0 0
    %1157 = vmatpush1.bf16.msra.mxu0 0
    %1158 = vmatprep.subr.bf16.mxu0 0
    %1159 = vmatpush1.bf16.msra.mxu0 0
    %1160 = vmatprep.mubr.bf16.mxu0 0
    %1161 = vmatmul.mubr.bf16.gmra.mrb[0].mxu0 %v1126
    %v1162 = vpop.f32.mrb[0].mxu0
    %v1163 = vadd.f32 0.0, %v1162
    %v1164 = vpop.f32.mrb[0].mxu0
    %v1165 = vpop.f32.mrb[0].mxu0
    %v1166 = vadd.f32 0.0, %v1165
    %v1167 = vpop.f32.mrb[0].mxu0
    %1168 = vdwg.mxu0
    %v1171 = vunpack.c.l.b16 %v1113
    %v1172 = vunpack.c.l.b16 %v1114
    %v1173 = vpack.c.b16 %v1172, %v1171
    %v1175 = vsel %vm160, %v1173, 0
    %1177 = vmatprep.subr.bf16.mxu0 0
    %1178 = vmatpush1.bf16.msra.mxu0 %v156
    %1179 = vmatprep.subr.bf16.mxu0 0
    %1180 = vmatpush1.bf16.msra.mxu0 %v157
    %1181 = vmatprep.subr.bf16.mxu0 0
    %1182 = vmatpush1.bf16.msra.mxu0 0
    %1183 = vmatprep.subr.bf16.mxu0 0
    %1184 = vmatpush1.bf16.msra.mxu0 0
    %1185 = vmatprep.subr.bf16.mxu0 0
    %1186 = vmatpush1.bf16.msra.mxu0 0
    %1187 = vmatprep.subr.bf16.mxu0 0
    %1188 = vmatpush1.bf16.msra.mxu0 0
    %1189 = vmatprep.subr.bf16.mxu0 0
    %1190 = vmatpush1.bf16.msra.mxu0 0
    %1191 = vmatprep.subr.bf16.mxu0 0
    %1192 = vmatpush1.bf16.msra.mxu0 0
    %1193 = vmatprep.subr.bf16.mxu0 0
    %1194 = vmatpush1.bf16.msra.mxu0 0
    %1195 = vmatprep.subr.bf16.mxu0 0
    %1196 = vmatpush1.bf16.msra.mxu0 0
    %1197 = vmatprep.subr.bf16.mxu0 0
    %1198 = vmatpush1.bf16.msra.mxu0 0
    %1199 = vmatprep.subr.bf16.mxu0 0
    %1200 = vmatpush1.bf16.msra.mxu0 0
    %1201 = vmatprep.subr.bf16.mxu0 0
    %1202 = vmatpush1.bf16.msra.mxu0 0
    %1203 = vmatprep.subr.bf16.mxu0 0
    %1204 = vmatpush1.bf16.msra.mxu0 0
    %1205 = vmatprep.subr.bf16.mxu0 0
    %1206 = vmatpush1.bf16.msra.mxu0 0
    %1207 = vmatprep.subr.bf16.mxu0 0
    %1208 = vmatpush1.bf16.msra.mxu0 0
    %1209 = vmatprep.mubr.bf16.mxu0 0
    %1210 = vmatmul.mubr.bf16.gmra.mrb[0].mxu0 %v1175
    %v1211 = vpop.f32.mrb[0].mxu0
    %v1212 = vadd.f32 0.0, %v1211
    %v1213 = vpop.f32.mrb[0].mxu0
    %v1214 = vpop.f32.mrb[0].mxu0
    %v1215 = vadd.f32 0.0, %v1214
    %v1216 = vpop.f32.mrb[0].mxu0
    %1217 = vdwg.mxu0
    %v1220 = vunpack.c.l.b16 %v1116
    %v1221 = vunpack.c.l.b16 %v1117
    %v1222 = vpack.c.b16 %v1221, %v1220
    %v1224 = vsel %vm265, %v1222, 0
    %1226 = vmatprep.subr.mxu0 0.0
    %1227 = vmatpush1.msra.mxu0 %v1163
    %1228 = vmatprep.subr.mxu0 0.0
    %1229 = vmatpush1.msra.mxu0 %v1166
    %1230 = vmatprep.subr.mxu0 0.0
    %1231 = vmatpush1.msra.mxu0 0.0
    %1232 = vmatprep.subr.mxu0 0.0
    %1233 = vmatpush1.msra.mxu0 0.0
    %1234 = vmatprep.subr.mxu0 0.0
    %1235 = vmatpush1.msra.mxu0 0.0
    %1236 = vmatprep.subr.mxu0 0.0
    %1237 = vmatpush1.msra.mxu0 0.0
    %1238 = vmatprep.subr.mxu0 0.0
    %1239 = vmatpush1.msra.mxu0 0.0
    %1240 = vmatprep.subr.mxu0 0.0
    %1241 = vmatpush1.msra.mxu0 0.0
    %1242 = vmatprep.subr.mxu0 0.0
    %1243 = vmatpush1.msra.mxu0 0.0
    %1244 = vmatprep.subr.mxu0 0.0
    %1245 = vmatpush1.msra.mxu0 0.0
    %1246 = vmatprep.subr.mxu0 0.0
    %1247 = vmatpush1.msra.mxu0 0.0
    %1248 = vmatprep.subr.mxu0 0.0
    %1249 = vmatpush1.msra.mxu0 0.0
    %1250 = vmatprep.subr.mxu0 0.0
    %1251 = vmatpush1.msra.mxu0 0.0
    %1252 = vmatprep.subr.mxu0 0.0
    %1253 = vmatpush1.msra.mxu0 0.0
    %1254 = vmatprep.subr.mxu0 0.0
    %1255 = vmatpush1.msra.mxu0 0.0
    %1256 = vmatprep.subr.mxu0 0.0
    %1257 = vmatpush1.msra.mxu0 0.0
    %1258 = vmatprep.subr.mxu0 0.0
    %1259 = vmatpush1.msra.mxu0 0.0
    %1260 = vmatprep.subr.mxu0 0.0
    %1261 = vmatpush1.msra.mxu0 0.0
    %1262 = vmatprep.subr.mxu0 0.0
    %1263 = vmatpush1.msra.mxu0 0.0
    %1264 = vmatprep.subr.mxu0 0.0
    %1265 = vmatpush1.msra.mxu0 0.0
    %1266 = vmatprep.subr.mxu0 0.0
    %1267 = vmatpush1.msra.mxu0 0.0
    %1268 = vmatprep.subr.mxu0 0.0
    %1269 = vmatpush1.msra.mxu0 0.0
    %1270 = vmatprep.subr.mxu0 0.0
    %1271 = vmatpush1.msra.mxu0 0.0
    %1272 = vmatprep.subr.mxu0 0.0
    %1273 = vmatpush1.msra.mxu0 0.0
    %1274 = vmatprep.subr.mxu0 0.0
    %1275 = vmatpush1.msra.mxu0 0.0
    %1276 = vmatprep.subr.mxu0 0.0
    %1277 = vmatpush1.msra.mxu0 0.0
    %1278 = vmatprep.subr.mxu0 0.0
    %1279 = vmatpush1.msra.mxu0 0.0
    %1280 = vmatprep.subr.mxu0 0.0
    %1281 = vmatpush1.msra.mxu0 0.0
    %1282 = vmatprep.subr.mxu0 0.0
    %1283 = vmatpush1.msra.mxu0 0.0
    %1284 = vmatprep.subr.mxu0 0.0
    %1285 = vmatpush1.msra.mxu0 0.0
    %1286 = vmatprep.subr.mxu0 0.0
    %1287 = vmatpush1.msra.mxu0 0.0
    %1288 = vmatprep.subr.mxu0 0.0
    %1289 = vmatpush1.msra.mxu0 0.0
    %1290 = vmatprep.mubr.bf16.mxu0 0
    %1291 = vmatmul.mubr.bf16.gmra.mrb[0].mxu0 %v1224
    %v1292 = vpop.f32.mrb[0].mxu0
    %v1293 = vadd.f32 %v258, %v1292
    %v1294 = vpop.f32.mrb[0].mxu0
    %v1295 = vpop.f32.mrb[0].mxu0
    %v1296 = vadd.f32 %v258, %v1295
    %v1297 = vpop.f32.mrb[0].mxu0
    %1298 = vdwg.mxu0
    %vm1299 = vcmp.gt.f32.partialorder %v1293, 0.0
    %vm1300 = vcmp.gt.f32.partialorder %v1296, 0.0
    %v1301 = vmul.f32 %v344, %v1293
    %v1302 = vmul.f32 %v344, %v1296
    %v1303 = vsel %vm1299, %v1293, %v1301
    %v1304 = vsel %vm1300, %v1296, %v1302
    %1305 = vmatprep.subr.mxu0 0.0
    %1306 = vmatpush1.msra.mxu0 %v1212
    %1307 = vmatprep.subr.mxu0 0.0
    %1308 = vmatpush1.msra.mxu0 %v1215
    %1309 = vmatprep.subr.mxu0 0.0
    %1310 = vmatpush1.msra.mxu0 0.0
    %1311 = vmatprep.subr.mxu0 0.0
    %1312 = vmatpush1.msra.mxu0 0.0
    %1313 = vmatprep.subr.mxu0 0.0
    %1314 = vmatpush1.msra.mxu0 0.0
    %1315 = vmatprep.subr.mxu0 0.0
    %1316 = vmatpush1.msra.mxu0 0.0
    %1317 = vmatprep.subr.mxu0 0.0
    %1318 = vmatpush1.msra.mxu0 0.0
    %1319 = vmatprep.subr.mxu0 0.0
    %1320 = vmatpush1.msra.mxu0 0.0
    %1321 = vmatprep.subr.mxu0 0.0
    %1322 = vmatpush1.msra.mxu0 0.0
    %1323 = vmatprep.subr.mxu0 0.0
    %1324 = vmatpush1.msra.mxu0 0.0
    %1325 = vmatprep.subr.mxu0 0.0
    %1326 = vmatpush1.msra.mxu0 0.0
    %1327 = vmatprep.subr.mxu0 0.0
    %1328 = vmatpush1.msra.mxu0 0.0
    %1329 = vmatprep.subr.mxu0 0.0
    %1330 = vmatpush1.msra.mxu0 0.0
    %1331 = vmatprep.subr.mxu0 0.0
    %1332 = vmatpush1.msra.mxu0 0.0
    %1333 = vmatprep.subr.mxu0 0.0
    %1334 = vmatpush1.msra.mxu0 0.0
    %1335 = vmatprep.subr.mxu0 0.0
    %1336 = vmatpush1.msra.mxu0 0.0
    %1337 = vmatprep.subr.mxu0 0.0
    %1338 = vmatpush1.msra.mxu0 0.0
    %1339 = vmatprep.subr.mxu0 0.0
    %1340 = vmatpush1.msra.mxu0 0.0
    %1341 = vmatprep.subr.mxu0 0.0
    %1342 = vmatpush1.msra.mxu0 0.0
    %1343 = vmatprep.subr.mxu0 0.0
    %1344 = vmatpush1.msra.mxu0 0.0
    %1345 = vmatprep.subr.mxu0 0.0
    %1346 = vmatpush1.msra.mxu0 0.0
    %1347 = vmatprep.subr.mxu0 0.0
    %1348 = vmatpush1.msra.mxu0 0.0
    %1349 = vmatprep.subr.mxu0 0.0
    %1350 = vmatpush1.msra.mxu0 0.0
    %1351 = vmatprep.subr.mxu0 0.0
    %1352 = vmatpush1.msra.mxu0 0.0
    %1353 = vmatprep.subr.mxu0 0.0
    %1354 = vmatpush1.msra.mxu0 0.0
    %1355 = vmatprep.subr.mxu0 0.0
    %1356 = vmatpush1.msra.mxu0 0.0
    %1357 = vmatprep.subr.mxu0 0.0
    %1358 = vmatpush1.msra.mxu0 0.0
    %1359 = vmatprep.subr.mxu0 0.0
    %1360 = vmatpush1.msra.mxu0 0.0
    %1361 = vmatprep.subr.mxu0 0.0
    %1362 = vmatpush1.msra.mxu0 0.0
    %1363 = vmatprep.subr.mxu0 0.0
    %1364 = vmatpush1.msra.mxu0 0.0
    %1365 = vmatprep.subr.mxu0 0.0
    %1366 = vmatpush1.msra.mxu0 0.0
    %1367 = vmatprep.subr.mxu0 0.0
    %1368 = vmatpush1.msra.mxu0 0.0
    %1369 = vmatprep.mubr.bf16.mxu0 0
    %1370 = vmatmul.mubr.bf16.gmra.mrb[0].mxu0 %v1224
    %v1371 = vpop.f32.mrb[0].mxu0
    %v1372 = vadd.f32 %v258, %v1371
    %v1373 = vpop.f32.mrb[0].mxu0
    %v1374 = vpop.f32.mrb[0].mxu0
    %v1375 = vadd.f32 %v258, %v1374
    %v1376 = vpop.f32.mrb[0].mxu0
    %1377 = vdwg.mxu0
    %vm1378 = vcmp.gt.f32.partialorder %v1372, 0.0
    %vm1379 = vcmp.gt.f32.partialorder %v1375, 0.0
    %v1380 = vmul.f32 %v344, %v1372
    %v1381 = vmul.f32 %v344, %v1375
    %v1382 = vsel %vm1378, %v1372, %v1380
    %v1383 = vsel %vm1379, %v1375, %v1381
    %s1384 = scalar_lea.vmem [#allocation13], 16
    %1385 = vst.msk [vmem:[%s1384] sm:$0xff] %vm160, %v1303
    %1386 = vst.msk [vmem:[%s1384 + $0x8] sm:$0xff] %vm160, %v1304
    %v1388 = vsel %vm265, %v1119, 0
    %1390 = vmatprep.subr.mxu0 0.0
    %1391 = vmatpush1.msra.mxu0 %v1303
    %1392 = vmatprep.subr.mxu0 0.0
    %1393 = vmatpush1.msra.mxu0 %v1304
    %1394 = vmatprep.subr.mxu0 0.0
    %1395 = vmatpush1.msra.mxu0 0.0
    %1396 = vmatprep.subr.mxu0 0.0
    %1397 = vmatpush1.msra.mxu0 0.0
    %1398 = vmatprep.subr.mxu0 0.0
    %1399 = vmatpush1.msra.mxu0 0.0
    %1400 = vmatprep.subr.mxu0 0.0
    %1401 = vmatpush1.msra.mxu0 0.0
    %1402 = vmatprep.subr.mxu0 0.0
    %1403 = vmatpush1.msra.mxu0 0.0
    %1404 = vmatprep.subr.mxu0 0.0
    %1405 = vmatpush1.msra.mxu0 0.0
    %1406 = vmatprep.subr.mxu0 0.0
    %1407 = vmatpush1.msra.mxu0 0.0
    %1408 = vmatprep.subr.mxu0 0.0
    %1409 = vmatpush1.msra.mxu0 0.0
    %1410 = vmatprep.subr.mxu0 0.0
    %1411 = vmatpush1.msra.mxu0 0.0
    %1412 = vmatprep.subr.mxu0 0.0
    %1413 = vmatpush1.msra.mxu0 0.0
    %1414 = vmatprep.subr.mxu0 0.0
    %1415 = vmatpush1.msra.mxu0 0.0
    %1416 = vmatprep.subr.mxu0 0.0
    %1417 = vmatpush1.msra.mxu0 0.0
    %1418 = vmatprep.subr.mxu0 0.0
    %1419 = vmatpush1.msra.mxu0 0.0
    %1420 = vmatprep.subr.mxu0 0.0
    %1421 = vmatpush1.msra.mxu0 0.0
    %1422 = vmatprep.subr.mxu0 0.0
    %1423 = vmatpush1.msra.mxu0 0.0
    %1424 = vmatprep.subr.mxu0 0.0
    %1425 = vmatpush1.msra.mxu0 0.0
    %1426 = vmatprep.subr.mxu0 0.0
    %1427 = vmatpush1.msra.mxu0 0.0
    %1428 = vmatprep.subr.mxu0 0.0
    %1429 = vmatpush1.msra.mxu0 0.0
    %1430 = vmatprep.subr.mxu0 0.0
    %1431 = vmatpush1.msra.mxu0 0.0
    %1432 = vmatprep.subr.mxu0 0.0
    %1433 = vmatpush1.msra.mxu0 0.0
    %1434 = vmatprep.subr.mxu0 0.0
    %1435 = vmatpush1.msra.mxu0 0.0
    %1436 = vmatprep.subr.mxu0 0.0
    %1437 = vmatpush1.msra.mxu0 0.0
    %1438 = vmatprep.subr.mxu0 0.0
    %1439 = vmatpush1.msra.mxu0 0.0
    %1440 = vmatprep.subr.mxu0 0.0
    %1441 = vmatpush1.msra.mxu0 0.0
    %1442 = vmatprep.subr.mxu0 0.0
    %1443 = vmatpush1.msra.mxu0 0.0
    %1444 = vmatprep.subr.mxu0 0.0
    %1445 = vmatpush1.msra.mxu0 0.0
    %1446 = vmatprep.subr.mxu0 0.0
    %1447 = vmatpush1.msra.mxu0 0.0
    %1448 = vmatprep.subr.mxu0 0.0
    %1449 = vmatpush1.msra.mxu0 0.0
    %1450 = vmatprep.subr.mxu0 0.0
    %1451 = vmatpush1.msra.mxu0 0.0
    %1452 = vmatprep.subr.mxu0 0.0
    %1453 = vmatpush1.msra.mxu0 0.0
    %1454 = vmatprep.mubr.f32.mxu0 0.0
    %1455 = vmatmul.mubr.f32.gmra.mrb[0].mxu0 %v1388
    %v1456 = vpop.f32.mrb[0].mxu0
    %v1457 = vadd.f32 0.0, %v1456
    %v1458 = vpop.f32.mrb[0].mxu0
    %1459 = vdwg.mxu0
    %v1460 = vxor.u32 %v1457, 2147483648
    %v1461 = vmul.f32 %v1460, 1.442695
    %v1462 = vpow.pop %v1461
    %v1463 = vadd.f32 %v1462, 1.0
    %v1464 = vrcp.pop %v1463
    %v1465 = vmul.f32 1.0, %v1464
    %v1467 = vsel %vm160, %v1465, 0
    %1469 = vmatprep.subr.bf16.mxu0 0
    %1470 = vmatpush1.bf16.msra.mxu0 %v517
    %1471 = vmatprep.subr.bf16.mxu0 0
    %1472 = vmatpush1.bf16.msra.mxu0 %v518
    %1473 = vmatprep.subr.bf16.mxu0 0
    %1474 = vmatpush1.bf16.msra.mxu0 0
    %1475 = vmatprep.subr.bf16.mxu0 0
    %1476 = vmatpush1.bf16.msra.mxu0 0
    %1477 = vmatprep.subr.bf16.mxu0 0
    %1478 = vmatpush1.bf16.msra.mxu0 0
    %1479 = vmatprep.subr.bf16.mxu0 0
    %1480 = vmatpush1.bf16.msra.mxu0 0
    %1481 = vmatprep.subr.bf16.mxu0 0
    %1482 = vmatpush1.bf16.msra.mxu0 0
    %1483 = vmatprep.subr.bf16.mxu0 0
    %1484 = vmatpush1.bf16.msra.mxu0 0
    %1485 = vmatprep.subr.bf16.mxu0 0
    %1486 = vmatpush1.bf16.msra.mxu0 0
    %1487 = vmatprep.subr.bf16.mxu0 0
    %1488 = vmatpush1.bf16.msra.mxu0 0
    %1489 = vmatprep.subr.bf16.mxu0 0
    %1490 = vmatpush1.bf16.msra.mxu0 0
    %1491 = vmatprep.subr.bf16.mxu0 0
    %1492 = vmatpush1.bf16.msra.mxu0 0
    %1493 = vmatprep.subr.bf16.mxu0 0
    %1494 = vmatpush1.bf16.msra.mxu0 0
    %1495 = vmatprep.subr.bf16.mxu0 0
    %1496 = vmatpush1.bf16.msra.mxu0 0
    %1497 = vmatprep.subr.bf16.mxu0 0
    %1498 = vmatpush1.bf16.msra.mxu0 0
    %1499 = vmatprep.subr.bf16.mxu0 0
    %1500 = vmatpush1.bf16.msra.mxu0 0
    %1501 = vmatprep.mubr.f32.mxu0 0.0
    %1502 = vmatmul.mubr.f32.gmra.mrb[0].mxu0 %v1467
    %v1503 = vpop.f32.mrb[0].mxu0
    %v1504 = vadd.f32 0.0, %v1503
    %v1505 = vpop.f32.mrb[0].mxu0
    %1506 = vdwg.mxu0
    %1507 = vmatprep.subr.bf16.mxu0 0
    %1508 = vmatpush1.bf16.msra.mxu0 %v570
    %1509 = vmatprep.subr.bf16.mxu0 0
    %1510 = vmatpush1.bf16.msra.mxu0 %v571
    %1511 = vmatprep.subr.bf16.mxu0 0
    %1512 = vmatpush1.bf16.msra.mxu0 0
    %1513 = vmatprep.subr.bf16.mxu0 0
    %1514 = vmatpush1.bf16.msra.mxu0 0
    %1515 = vmatprep.subr.bf16.mxu0 0
    %1516 = vmatpush1.bf16.msra.mxu0 0
    %1517 = vmatprep.subr.bf16.mxu0 0
    %1518 = vmatpush1.bf16.msra.mxu0 0
    %1519 = vmatprep.subr.bf16.mxu0 0
    %1520 = vmatpush1.bf16.msra.mxu0 0
    %1521 = vmatprep.subr.bf16.mxu0 0
    %1522 = vmatpush1.bf16.msra.mxu0 0
    %1523 = vmatprep.subr.bf16.mxu0 0
    %1524 = vmatpush1.bf16.msra.mxu0 0
    %1525 = vmatprep.subr.bf16.mxu0 0
    %1526 = vmatpush1.bf16.msra.mxu0 0
    %1527 = vmatprep.subr.bf16.mxu0 0
    %1528 = vmatpush1.bf16.msra.mxu0 0
    %1529 = vmatprep.subr.bf16.mxu0 0
    %1530 = vmatpush1.bf16.msra.mxu0 0
    %1531 = vmatprep.subr.bf16.mxu0 0
    %1532 = vmatpush1.bf16.msra.mxu0 0
    %1533 = vmatprep.subr.bf16.mxu0 0
    %1534 = vmatpush1.bf16.msra.mxu0 0
    %1535 = vmatprep.subr.bf16.mxu0 0
    %1536 = vmatpush1.bf16.msra.mxu0 0
    %1537 = vmatprep.subr.bf16.mxu0 0
    %1538 = vmatpush1.bf16.msra.mxu0 0
    %1539 = vmatprep.mubr.f32.mxu0 0.0
    %1540 = vmatmul.mubr.f32.gmra.mrb[0].mxu0 %v1467
    %v1541 = vpop.f32.mrb[0].mxu0
    %v1542 = vadd.f32 0.0, %v1541
    %v1543 = vpop.f32.mrb[0].mxu0
    %1544 = vdwg.mxu0
    %v1546 = vsel %vm160, %v1504, 0
    %v1549 = vsel %vm160, %v1303, 0
    %v1552 = vsel %vm160, %v1304, 0
    %1554 = vmatprep.subr.mxu0 0.0
    %1555 = vmatpush1.xpose.msra.mxu0 %v1549
    %1556 = vmatprep.subr.mxu0 0.0
    %1557 = vmatpush1.xpose.msra.mxu0 %v1552
    %1558 = vmatprep.subr.mxu0 0.0
    %1559 = vmatpush1.xpose.msra.mxu0 0.0
    %1560 = vmatprep.subr.mxu0 0.0
    %1561 = vmatpush1.xpose.msra.mxu0 0.0
    %1562 = vmatprep.subr.mxu0 0.0
    %1563 = vmatpush1.xpose.msra.mxu0 0.0
    %1564 = vmatprep.subr.mxu0 0.0
    %1565 = vmatpush1.xpose.msra.mxu0 0.0
    %1566 = vmatprep.subr.mxu0 0.0
    %1567 = vmatpush1.xpose.msra.mxu0 0.0
    %1568 = vmatprep.subr.mxu0 0.0
    %1569 = vmatpush1.xpose.msra.mxu0 0.0
    %1570 = vmatprep.subr.mxu0 0.0
    %1571 = vmatpush1.xpose.msra.mxu0 0.0
    %1572 = vmatprep.subr.mxu0 0.0
    %1573 = vmatpush1.xpose.msra.mxu0 0.0
    %1574 = vmatprep.subr.mxu0 0.0
    %1575 = vmatpush1.xpose.msra.mxu0 0.0
    %1576 = vmatprep.subr.mxu0 0.0
    %1577 = vmatpush1.xpose.msra.mxu0 0.0
    %1578 = vmatprep.subr.mxu0 0.0
    %1579 = vmatpush1.xpose.msra.mxu0 0.0
    %1580 = vmatprep.subr.mxu0 0.0
    %1581 = vmatpush1.xpose.msra.mxu0 0.0
    %1582 = vmatprep.subr.mxu0 0.0
    %1583 = vmatpush1.xpose.msra.mxu0 0.0
    %1584 = vmatprep.subr.mxu0 0.0
    %1585 = vmatpush1.xpose.msra.mxu0 0.0
    %1586 = vmatprep.subr.mxu0 0.0
    %1587 = vmatpush1.xpose.msra.mxu0 0.0
    %1588 = vmatprep.subr.mxu0 0.0
    %1589 = vmatpush1.xpose.msra.mxu0 0.0
    %1590 = vmatprep.subr.mxu0 0.0
    %1591 = vmatpush1.xpose.msra.mxu0 0.0
    %1592 = vmatprep.subr.mxu0 0.0
    %1593 = vmatpush1.xpose.msra.mxu0 0.0
    %1594 = vmatprep.subr.mxu0 0.0
    %1595 = vmatpush1.xpose.msra.mxu0 0.0
    %1596 = vmatprep.subr.mxu0 0.0
    %1597 = vmatpush1.xpose.msra.mxu0 0.0
    %1598 = vmatprep.subr.mxu0 0.0
    %1599 = vmatpush1.xpose.msra.mxu0 0.0
    %1600 = vmatprep.subr.mxu0 0.0
    %1601 = vmatpush1.xpose.msra.mxu0 0.0
    %1602 = vmatprep.subr.mxu0 0.0
    %1603 = vmatpush1.xpose.msra.mxu0 0.0
    %1604 = vmatprep.subr.mxu0 0.0
    %1605 = vmatpush1.xpose.msra.mxu0 0.0
    %1606 = vmatprep.subr.mxu0 0.0
    %1607 = vmatpush1.xpose.msra.mxu0 0.0
    %1608 = vmatprep.subr.mxu0 0.0
    %1609 = vmatpush1.xpose.msra.mxu0 0.0
    %1610 = vmatprep.subr.mxu0 0.0
    %1611 = vmatpush1.xpose.msra.mxu0 0.0
    %1612 = vmatprep.subr.mxu0 0.0
    %1613 = vmatpush1.xpose.msra.mxu0 0.0
    %1614 = vmatprep.subr.mxu0 0.0
    %1615 = vmatpush1.xpose.msra.mxu0 0.0
    %1616 = vmatprep.subr.mxu0 0.0
    %1617 = vmatpush1.xpose.msra.mxu0 0.0
    %1618 = vmatprep.mubr.f32.mxu0 0.0
    %1619 = vmatmul.mubr.f32.gmra.mrb[0].mxu0 %v1546
    %v1620 = vpop.f32.mrb[0].mxu0
    %v1621 = vadd.f32 %v612, %v1620
    %v1622 = vpop.f32.mrb[0].mxu0
    %1623 = vdwg.mxu0
    %s1624 = scalar_lea.vmem [#allocation14], 2
    %1625 = vst.msk [vmem:[%s1624] sm:$0x1] %vm692, %v1621
    %v1627 = vsel %vm160, %v1382, 0
    %v1630 = vsel %vm160, %v1383, 0
    %1632 = vmatprep.subr.mxu0 0.0
    %1633 = vmatpush1.xpose.msra.mxu0 %v1627
    %1634 = vmatprep.subr.mxu0 0.0
    %1635 = vmatpush1.xpose.msra.mxu0 %v1630
    %1636 = vmatprep.subr.mxu0 0.0
    %1637 = vmatpush1.xpose.msra.mxu0 0.0
    %1638 = vmatprep.subr.mxu0 0.0
    %1639 = vmatpush1.xpose.msra.mxu0 0.0
    %1640 = vmatprep.subr.mxu0 0.0
    %1641 = vmatpush1.xpose.msra.mxu0 0.0
    %1642 = vmatprep.subr.mxu0 0.0
    %1643 = vmatpush1.xpose.msra.mxu0 0.0
    %1644 = vmatprep.subr.mxu0 0.0
    %1645 = vmatpush1.xpose.msra.mxu0 0.0
    %1646 = vmatprep.subr.mxu0 0.0
    %1647 = vmatpush1.xpose.msra.mxu0 0.0
    %1648 = vmatprep.subr.mxu0 0.0
    %1649 = vmatpush1.xpose.msra.mxu0 0.0
    %1650 = vmatprep.subr.mxu0 0.0
    %1651 = vmatpush1.xpose.msra.mxu0 0.0
    %1652 = vmatprep.subr.mxu0 0.0
    %1653 = vmatpush1.xpose.msra.mxu0 0.0
    %1654 = vmatprep.subr.mxu0 0.0
    %1655 = vmatpush1.xpose.msra.mxu0 0.0
    %1656 = vmatprep.subr.mxu0 0.0
    %1657 = vmatpush1.xpose.msra.mxu0 0.0
    %1658 = vmatprep.subr.mxu0 0.0
    %1659 = vmatpush1.xpose.msra.mxu0 0.0
    %1660 = vmatprep.subr.mxu0 0.0
    %1661 = vmatpush1.xpose.msra.mxu0 0.0
    %1662 = vmatprep.subr.mxu0 0.0
    %1663 = vmatpush1.xpose.msra.mxu0 0.0
    %1664 = vmatprep.subr.mxu0 0.0
    %1665 = vmatpush1.xpose.msra.mxu0 0.0
    %1666 = vmatprep.subr.mxu0 0.0
    %1667 = vmatpush1.xpose.msra.mxu0 0.0
    %1668 = vmatprep.subr.mxu0 0.0
    %1669 = vmatpush1.xpose.msra.mxu0 0.0
    %1670 = vmatprep.subr.mxu0 0.0
    %1671 = vmatpush1.xpose.msra.mxu0 0.0
    %1672 = vmatprep.subr.mxu0 0.0
    %1673 = vmatpush1.xpose.msra.mxu0 0.0
    %1674 = vmatprep.subr.mxu0 0.0
    %1675 = vmatpush1.xpose.msra.mxu0 0.0
    %1676 = vmatprep.subr.mxu0 0.0
    %1677 = vmatpush1.xpose.msra.mxu0 0.0
    %1678 = vmatprep.subr.mxu0 0.0
    %1679 = vmatpush1.xpose.msra.mxu0 0.0
    %1680 = vmatprep.subr.mxu0 0.0
    %1681 = vmatpush1.xpose.msra.mxu0 0.0
    %1682 = vmatprep.subr.mxu0 0.0
    %1683 = vmatpush1.xpose.msra.mxu0 0.0
    %1684 = vmatprep.subr.mxu0 0.0
    %1685 = vmatpush1.xpose.msra.mxu0 0.0
    %1686 = vmatprep.subr.mxu0 0.0
    %1687 = vmatpush1.xpose.msra.mxu0 0.0
    %1688 = vmatprep.subr.mxu0 0.0
    %1689 = vmatpush1.xpose.msra.mxu0 0.0
    %1690 = vmatprep.subr.mxu0 0.0
    %1691 = vmatpush1.xpose.msra.mxu0 0.0
    %1692 = vmatprep.subr.mxu0 0.0
    %1693 = vmatpush1.xpose.msra.mxu0 0.0
    %1694 = vmatprep.subr.mxu0 0.0
    %1695 = vmatpush1.xpose.msra.mxu0 0.0
    %1696 = vmatprep.mubr.f32.mxu0 0.0
    %1697 = vmatmul.mubr.f32.gmra.mrb[0].mxu0 %v1546
    %v1698 = vpop.f32.mrb[0].mxu0
    %v1699 = vadd.f32 %v612, %v1698
    %v1700 = vpop.f32.mrb[0].mxu0
    %1701 = vdwg.mxu0
    %1702 = vst.msk [vmem:[%s1624 + $0x1] sm:$0x1] %vm692, %v1699
    %1703 = vrot.lane.b32.xlu0 %v1303, 32
    %v1704 = vpop.permute.xlu0 %1703
    %1705 = vrot.lane.b32.xlu0 %v1304, 32
    %v1706 = vpop.permute.xlu0 %1705
    %v1709 = vmul.f32 %v1163, %v1704
    %v1710 = vmul.f32 %v1166, %v1706
    %1713 = vrot.lane.b32.xlu0 %v1709, 96
    %v1714 = vpop.permute.xlu0 %1713
    %1715 = vrot.lane.b32.xlu0 %v1710, 96
    %v1716 = vpop.permute.xlu0 %1715
    %v1717 = vsel %vm160, %v1714, 0
    %v1719 = vsel %vm160, %v1716, 0
    %1721 = vmatprep.subr.mxu0 0.0
    %1722 = vmatpush1.xpose.msra.mxu0 %v1717
    %1723 = vmatprep.subr.mxu0 0.0
    %1724 = vmatpush1.xpose.msra.mxu0 %v1719
    %1725 = vmatprep.subr.mxu0 0.0
    %1726 = vmatpush1.xpose.msra.mxu0 0.0
    %1727 = vmatprep.subr.mxu0 0.0
    %1728 = vmatpush1.xpose.msra.mxu0 0.0
    %1729 = vmatprep.subr.mxu0 0.0
    %1730 = vmatpush1.xpose.msra.mxu0 0.0
    %1731 = vmatprep.subr.mxu0 0.0
    %1732 = vmatpush1.xpose.msra.mxu0 0.0
    %1733 = vmatprep.subr.mxu0 0.0
    %1734 = vmatpush1.xpose.msra.mxu0 0.0
    %1735 = vmatprep.subr.mxu0 0.0
    %1736 = vmatpush1.xpose.msra.mxu0 0.0
    %1737 = vmatprep.subr.mxu0 0.0
    %1738 = vmatpush1.xpose.msra.mxu0 0.0
    %1739 = vmatprep.subr.mxu0 0.0
    %1740 = vmatpush1.xpose.msra.mxu0 0.0
    %1741 = vmatprep.subr.mxu0 0.0
    %1742 = vmatpush1.xpose.msra.mxu0 0.0
    %1743 = vmatprep.subr.mxu0 0.0
    %1744 = vmatpush1.xpose.msra.mxu0 0.0
    %1745 = vmatprep.subr.mxu0 0.0
    %1746 = vmatpush1.xpose.msra.mxu0 0.0
    %1747 = vmatprep.subr.mxu0 0.0
    %1748 = vmatpush1.xpose.msra.mxu0 0.0
    %1749 = vmatprep.subr.mxu0 0.0
    %1750 = vmatpush1.xpose.msra.mxu0 0.0
    %1751 = vmatprep.subr.mxu0 0.0
    %1752 = vmatpush1.xpose.msra.mxu0 0.0
    %1753 = vmatprep.subr.mxu0 0.0
    %1754 = vmatpush1.xpose.msra.mxu0 0.0
    %1755 = vmatprep.subr.mxu0 0.0
    %1756 = vmatpush1.xpose.msra.mxu0 0.0
    %1757 = vmatprep.subr.mxu0 0.0
    %1758 = vmatpush1.xpose.msra.mxu0 0.0
    %1759 = vmatprep.subr.mxu0 0.0
    %1760 = vmatpush1.xpose.msra.mxu0 0.0
    %1761 = vmatprep.subr.mxu0 0.0
    %1762 = vmatpush1.xpose.msra.mxu0 0.0
    %1763 = vmatprep.subr.mxu0 0.0
    %1764 = vmatpush1.xpose.msra.mxu0 0.0
    %1765 = vmatprep.subr.mxu0 0.0
    %1766 = vmatpush1.xpose.msra.mxu0 0.0
    %1767 = vmatprep.subr.mxu0 0.0
    %1768 = vmatpush1.xpose.msra.mxu0 0.0
    %1769 = vmatprep.subr.mxu0 0.0
    %1770 = vmatpush1.xpose.msra.mxu0 0.0
    %1771 = vmatprep.subr.mxu0 0.0
    %1772 = vmatpush1.xpose.msra.mxu0 0.0
    %1773 = vmatprep.subr.mxu0 0.0
    %1774 = vmatpush1.xpose.msra.mxu0 0.0
    %1775 = vmatprep.subr.mxu0 0.0
    %1776 = vmatpush1.xpose.msra.mxu0 0.0
    %1777 = vmatprep.subr.mxu0 0.0
    %1778 = vmatpush1.xpose.msra.mxu0 0.0
    %1779 = vmatprep.subr.mxu0 0.0
    %1780 = vmatpush1.xpose.msra.mxu0 0.0
    %1781 = vmatprep.subr.mxu0 0.0
    %1782 = vmatpush1.xpose.msra.mxu0 0.0
    %1783 = vmatprep.subr.mxu0 0.0
    %1784 = vmatpush1.xpose.msra.mxu0 0.0
    %1785 = vmatprep.mubr.f32.mxu0 0.0
    %1786 = vmatmul.mubr.f32.gmra.mrb[0].mxu0 %v787
    %v1787 = vpop.f32.mrb[0].mxu0
    %v1788 = vadd.f32 %v779, %v1787
    %v1789 = vpop.f32.mrb[0].mxu0
    %1790 = vdwg.mxu0
    %s1791 = scalar_lea.vmem [#allocation16], 2
    %1792 = vst.msk [vmem:[%s1791] sm:$0x1] %vm692, %v1788
    %v1793 = vmul.f32 %v1212, %v1704
    %v1794 = vmul.f32 %v1215, %v1706
    %1797 = vrot.lane.b32.xlu0 %v1793, 96
    %v1798 = vpop.permute.xlu0 %1797
    %1799 = vrot.lane.b32.xlu0 %v1794, 96
    %v1800 = vpop.permute.xlu0 %1799
    %v1801 = vsel %vm160, %v1798, 0
    %v1803 = vsel %vm160, %v1800, 0
    %1805 = vmatprep.subr.mxu0 0.0
    %1806 = vmatpush1.xpose.msra.mxu0 %v1801
    %1807 = vmatprep.subr.mxu0 0.0
    %1808 = vmatpush1.xpose.msra.mxu0 %v1803
    %1809 = vmatprep.subr.mxu0 0.0
    %1810 = vmatpush1.xpose.msra.mxu0 0.0
    %1811 = vmatprep.subr.mxu0 0.0
    %1812 = vmatpush1.xpose.msra.mxu0 0.0
    %1813 = vmatprep.subr.mxu0 0.0
    %1814 = vmatpush1.xpose.msra.mxu0 0.0
    %1815 = vmatprep.subr.mxu0 0.0
    %1816 = vmatpush1.xpose.msra.mxu0 0.0
    %1817 = vmatprep.subr.mxu0 0.0
    %1818 = vmatpush1.xpose.msra.mxu0 0.0
    %1819 = vmatprep.subr.mxu0 0.0
    %1820 = vmatpush1.xpose.msra.mxu0 0.0
    %1821 = vmatprep.subr.mxu0 0.0
    %1822 = vmatpush1.xpose.msra.mxu0 0.0
    %1823 = vmatprep.subr.mxu0 0.0
    %1824 = vmatpush1.xpose.msra.mxu0 0.0
    %1825 = vmatprep.subr.mxu0 0.0
    %1826 = vmatpush1.xpose.msra.mxu0 0.0
    %1827 = vmatprep.subr.mxu0 0.0
    %1828 = vmatpush1.xpose.msra.mxu0 0.0
    %1829 = vmatprep.subr.mxu0 0.0
    %1830 = vmatpush1.xpose.msra.mxu0 0.0
    %1831 = vmatprep.subr.mxu0 0.0
    %1832 = vmatpush1.xpose.msra.mxu0 0.0
    %1833 = vmatprep.subr.mxu0 0.0
    %1834 = vmatpush1.xpose.msra.mxu0 0.0
    %1835 = vmatprep.subr.mxu0 0.0
    %1836 = vmatpush1.xpose.msra.mxu0 0.0
    %1837 = vmatprep.subr.mxu0 0.0
    %1838 = vmatpush1.xpose.msra.mxu0 0.0
    %1839 = vmatprep.subr.mxu0 0.0
    %1840 = vmatpush1.xpose.msra.mxu0 0.0
    %1841 = vmatprep.subr.mxu0 0.0
    %1842 = vmatpush1.xpose.msra.mxu0 0.0
    %1843 = vmatprep.subr.mxu0 0.0
    %1844 = vmatpush1.xpose.msra.mxu0 0.0
    %1845 = vmatprep.subr.mxu0 0.0
    %1846 = vmatpush1.xpose.msra.mxu0 0.0
    %1847 = vmatprep.subr.mxu0 0.0
    %1848 = vmatpush1.xpose.msra.mxu0 0.0
    %1849 = vmatprep.subr.mxu0 0.0
    %1850 = vmatpush1.xpose.msra.mxu0 0.0
    %1851 = vmatprep.subr.mxu0 0.0
    %1852 = vmatpush1.xpose.msra.mxu0 0.0
    %1853 = vmatprep.subr.mxu0 0.0
    %1854 = vmatpush1.xpose.msra.mxu0 0.0
    %1855 = vmatprep.subr.mxu0 0.0
    %1856 = vmatpush1.xpose.msra.mxu0 0.0
    %1857 = vmatprep.subr.mxu0 0.0
    %1858 = vmatpush1.xpose.msra.mxu0 0.0
    %1859 = vmatprep.subr.mxu0 0.0
    %1860 = vmatpush1.xpose.msra.mxu0 0.0
    %1861 = vmatprep.subr.mxu0 0.0
    %1862 = vmatpush1.xpose.msra.mxu0 0.0
    %1863 = vmatprep.subr.mxu0 0.0
    %1864 = vmatpush1.xpose.msra.mxu0 0.0
    %1865 = vmatprep.subr.mxu0 0.0
    %1866 = vmatpush1.xpose.msra.mxu0 0.0
    %1867 = vmatprep.subr.mxu0 0.0
    %1868 = vmatpush1.xpose.msra.mxu0 0.0
    %1869 = vmatprep.mubr.f32.mxu0 0.0
    %1870 = vmatmul.mubr.f32.gmra.mrb[0].mxu0 %v787
    %v1871 = vpop.f32.mrb[0].mxu0
    %v1872 = vadd.f32 %v779, %v1871
    %v1873 = vpop.f32.mrb[0].mxu0
    %1874 = vdwg.mxu0
    %1875 = vst.msk [vmem:[%s1791 + $0x1] sm:$0x1] %vm692, %v1872
    %v1876 = vunpack.c.l.bf16 %v1110
    %v1877 = vunpack.c.l.bf16 %v1111
    %v1879 = vsel %vm160, %v1542, 0
    %v1882 = vsel %vm160, %v1876, 0
    %v1885 = vsel %vm160, %v1877, 0
    %1887 = vmatprep.subr.mxu0 0.0
    %1888 = vmatpush1.xpose.msra.mxu0 %v1882
    %1889 = vmatprep.subr.mxu0 0.0
    %1890 = vmatpush1.xpose.msra.mxu0 %v1885
    %1891 = vmatprep.subr.mxu0 0.0
    %1892 = vmatpush1.xpose.msra.mxu0 0.0
    %1893 = vmatprep.subr.mxu0 0.0
    %1894 = vmatpush1.xpose.msra.mxu0 0.0
    %1895 = vmatprep.subr.mxu0 0.0
    %1896 = vmatpush1.xpose.msra.mxu0 0.0
    %1897 = vmatprep.subr.mxu0 0.0
    %1898 = vmatpush1.xpose.msra.mxu0 0.0
    %1899 = vmatprep.subr.mxu0 0.0
    %1900 = vmatpush1.xpose.msra.mxu0 0.0
    %1901 = vmatprep.subr.mxu0 0.0
    %1902 = vmatpush1.xpose.msra.mxu0 0.0
    %1903 = vmatprep.subr.mxu0 0.0
    %1904 = vmatpush1.xpose.msra.mxu0 0.0
    %1905 = vmatprep.subr.mxu0 0.0
    %1906 = vmatpush1.xpose.msra.mxu0 0.0
    %1907 = vmatprep.subr.mxu0 0.0
    %1908 = vmatpush1.xpose.msra.mxu0 0.0
    %1909 = vmatprep.subr.mxu0 0.0
    %1910 = vmatpush1.xpose.msra.mxu0 0.0
    %1911 = vmatprep.subr.mxu0 0.0
    %1912 = vmatpush1.xpose.msra.mxu0 0.0
    %1913 = vmatprep.subr.mxu0 0.0
    %1914 = vmatpush1.xpose.msra.mxu0 0.0
    %1915 = vmatprep.subr.mxu0 0.0
    %1916 = vmatpush1.xpose.msra.mxu0 0.0
    %1917 = vmatprep.subr.mxu0 0.0
    %1918 = vmatpush1.xpose.msra.mxu0 0.0
    %1919 = vmatprep.subr.mxu0 0.0
    %1920 = vmatpush1.xpose.msra.mxu0 0.0
    %1921 = vmatprep.subr.mxu0 0.0
    %1922 = vmatpush1.xpose.msra.mxu0 0.0
    %1923 = vmatprep.subr.mxu0 0.0
    %1924 = vmatpush1.xpose.msra.mxu0 0.0
    %1925 = vmatprep.subr.mxu0 0.0
    %1926 = vmatpush1.xpose.msra.mxu0 0.0
    %1927 = vmatprep.subr.mxu0 0.0
    %1928 = vmatpush1.xpose.msra.mxu0 0.0
    %1929 = vmatprep.subr.mxu0 0.0
    %1930 = vmatpush1.xpose.msra.mxu0 0.0
    %1931 = vmatprep.subr.mxu0 0.0
    %1932 = vmatpush1.xpose.msra.mxu0 0.0
    %1933 = vmatprep.subr.mxu0 0.0
    %1934 = vmatpush1.xpose.msra.mxu0 0.0
    %1935 = vmatprep.subr.mxu0 0.0
    %1936 = vmatpush1.xpose.msra.mxu0 0.0
    %1937 = vmatprep.subr.mxu0 0.0
    %1938 = vmatpush1.xpose.msra.mxu0 0.0
    %1939 = vmatprep.subr.mxu0 0.0
    %1940 = vmatpush1.xpose.msra.mxu0 0.0
    %1941 = vmatprep.subr.mxu0 0.0
    %1942 = vmatpush1.xpose.msra.mxu0 0.0
    %1943 = vmatprep.subr.mxu0 0.0
    %1944 = vmatpush1.xpose.msra.mxu0 0.0
    %1945 = vmatprep.subr.mxu0 0.0
    %1946 = vmatpush1.xpose.msra.mxu0 0.0
    %1947 = vmatprep.subr.mxu0 0.0
    %1948 = vmatpush1.xpose.msra.mxu0 0.0
    %1949 = vmatprep.subr.mxu0 0.0
    %1950 = vmatpush1.xpose.msra.mxu0 0.0
    %1951 = vmatprep.mubr.f32.mxu0 0.0
    %1952 = vmatmul.mubr.f32.gmra.mrb[0].mxu0 %v1879
    %v1953 = vpop.f32.mrb[0].mxu0
    %v1954 = vadd.f32 %v949, %v1953
    %v1955 = vpop.f32.mrb[0].mxu0
    %1956 = vdwg.mxu0
    %s1957 = scalar_lea.vmem [#allocation17], 2
    %1958 = vst.msk [vmem:[%s1957] sm:$0x1] %vm692, %v1954
    %v1959 = vunpack.c.l.bf16 %v1113
    %v1960 = vunpack.c.l.bf16 %v1114
    %v1962 = vsel %vm160, %v1959, 0
    %v1965 = vsel %vm160, %v1960, 0
    %1967 = vmatprep.subr.mxu0 0.0
    %1968 = vmatpush1.xpose.msra.mxu0 %v1962
    %1969 = vmatprep.subr.mxu0 0.0
    %1970 = vmatpush1.xpose.msra.mxu0 %v1965
    %1971 = vmatprep.subr.mxu0 0.0
    %1972 = vmatpush1.xpose.msra.mxu0 0.0
    %1973 = vmatprep.subr.mxu0 0.0
    %1974 = vmatpush1.xpose.msra.mxu0 0.0
    %1975 = vmatprep.subr.mxu0 0.0
    %1976 = vmatpush1.xpose.msra.mxu0 0.0
    %1977 = vmatprep.subr.mxu0 0.0
    %1978 = vmatpush1.xpose.msra.mxu0 0.0
    %1979 = vmatprep.subr.mxu0 0.0
    %1980 = vmatpush1.xpose.msra.mxu0 0.0
    %1981 = vmatprep.subr.mxu0 0.0
    %1982 = vmatpush1.xpose.msra.mxu0 0.0
    %1983 = vmatprep.subr.mxu0 0.0
    %1984 = vmatpush1.xpose.msra.mxu0 0.0
    %1985 = vmatprep.subr.mxu0 0.0
    %1986 = vmatpush1.xpose.msra.mxu0 0.0
    %1987 = vmatprep.subr.mxu0 0.0
    %1988 = vmatpush1.xpose.msra.mxu0 0.0
    %1989 = vmatprep.subr.mxu0 0.0
    %1990 = vmatpush1.xpose.msra.mxu0 0.0
    %1991 = vmatprep.subr.mxu0 0.0
    %1992 = vmatpush1.xpose.msra.mxu0 0.0
    %1993 = vmatprep.subr.mxu0 0.0
    %1994 = vmatpush1.xpose.msra.mxu0 0.0
    %1995 = vmatprep.subr.mxu0 0.0
    %1996 = vmatpush1.xpose.msra.mxu0 0.0
    %1997 = vmatprep.subr.mxu0 0.0
    %1998 = vmatpush1.xpose.msra.mxu0 0.0
    %1999 = vmatprep.subr.mxu0 0.0
    %2000 = vmatpush1.xpose.msra.mxu0 0.0
    %2001 = vmatprep.subr.mxu0 0.0
    %2002 = vmatpush1.xpose.msra.mxu0 0.0
    %2003 = vmatprep.subr.mxu0 0.0
    %2004 = vmatpush1.xpose.msra.mxu0 0.0
    %2005 = vmatprep.subr.mxu0 0.0
    %2006 = vmatpush1.xpose.msra.mxu0 0.0
    %2007 = vmatprep.subr.mxu0 0.0
    %2008 = vmatpush1.xpose.msra.mxu0 0.0
    %2009 = vmatprep.subr.mxu0 0.0
    %2010 = vmatpush1.xpose.msra.mxu0 0.0
    %2011 = vmatprep.subr.mxu0 0.0
    %2012 = vmatpush1.xpose.msra.mxu0 0.0
    %2013 = vmatprep.subr.mxu0 0.0
    %2014 = vmatpush1.xpose.msra.mxu0 0.0
    %2015 = vmatprep.subr.mxu0 0.0
    %2016 = vmatpush1.xpose.msra.mxu0 0.0
    %2017 = vmatprep.subr.mxu0 0.0
    %2018 = vmatpush1.xpose.msra.mxu0 0.0
    %2019 = vmatprep.subr.mxu0 0.0
    %2020 = vmatpush1.xpose.msra.mxu0 0.0
    %2021 = vmatprep.subr.mxu0 0.0
    %2022 = vmatpush1.xpose.msra.mxu0 0.0
    %2023 = vmatprep.subr.mxu0 0.0
    %2024 = vmatpush1.xpose.msra.mxu0 0.0
    %2025 = vmatprep.subr.mxu0 0.0
    %2026 = vmatpush1.xpose.msra.mxu0 0.0
    %2027 = vmatprep.subr.mxu0 0.0
    %2028 = vmatpush1.xpose.msra.mxu0 0.0
    %2029 = vmatprep.subr.mxu0 0.0
    %2030 = vmatpush1.xpose.msra.mxu0 0.0
    %2031 = vmatprep.mubr.f32.mxu0 0.0
    %2032 = vmatmul.mubr.f32.gmra.mrb[0].mxu0 %v1879
    %v2033 = vpop.f32.mrb[0].mxu0
    %v2034 = vadd.f32 %v949, %v2033
    %v2035 = vpop.f32.mrb[0].mxu0
    %2036 = vdwg.mxu0
    %2037 = vst.msk [vmem:[%s1957 + $0x1] sm:$0x1] %vm692, %v2034
    // Predicated region
    $region62: #{tpu_custom_call.1} parent=1 // pred_check
      _
    $region63: #{tpu_custom_call.1} parent=1 // pred_check_branch
      %2039 = sbr.rel (0) target = $region65
    $region64: #{tpu_custom_call.1} parent=1 // pred_region
      %s2041 = ssub.s32 512, 512
      %2042 = vsyncadd [#allocation4], %s2041
      %s2043 = sshll.u32 [#allocation13], 4
      %s2044 = int_to_ptr.vmem [resolvable:$true] %s2043
      %2049 = dma.vmem_to_hbm [thread:$0]  %s2044, 512, %s9, [#allocation4], 128, 128, 8
    $region65: #{tpu_custom_call.1} parent=1 // pred_fallthru
      _
    // Predicated region
    $region66: #{tpu_custom_call.1} parent=1 // pred_check
      _
    $region67: #{tpu_custom_call.1} parent=1 // pred_check_branch
      %2051 = sbr.rel (0) target = $region69
    $region68: #{tpu_custom_call.1} parent=1 // pred_region
      %s2053 = ssub.s32 64, 64
      %2054 = vsyncadd [#allocation15], %s2053
      %s2055 = sshll.u32 [#allocation14], 4
      %s2056 = int_to_ptr.vmem [resolvable:$true] %s2055
      %2061 = dma.vmem_to_hbm [thread:$0]  %s2056, 64, %s10, [#allocation15], 32, 32, 2
    $region69: #{tpu_custom_call.1} parent=1 // pred_fallthru
      _
    // Predicated region
    $region70: #{tpu_custom_call.1} parent=1 // pred_check
      _
    $region71: #{tpu_custom_call.1} parent=1 // pred_check_branch
      %2063 = sbr.rel (0) target = $region73
    $region72: #{tpu_custom_call.1} parent=1 // pred_region
      %s2065 = ssub.s32 64, 64
      %2066 = vsyncadd [#allocation15], %s2065
      %s2067 = sshll.u32 [#allocation16], 4
      %s2068 = int_to_ptr.vmem [resolvable:$true] %s2067
      %2073 = dma.vmem_to_hbm [thread:$0]  %s2068, 64, %s11, [#allocation15], 32, 32, 2
    $region73: #{tpu_custom_call.1} parent=1 // pred_fallthru
      _
    // Predicated region
    $region74: #{tpu_custom_call.1} parent=1 // pred_check
      _
    $region75: #{tpu_custom_call.1} parent=1 // pred_check_branch
      %2075 = sbr.rel (0) target = $region77
    $region76: #{tpu_custom_call.1} parent=1 // pred_region
      %s2077 = ssub.s32 64, 64
      %2078 = vsyncadd [#allocation18], %s2077
      %s2079 = sshll.u32 [#allocation17], 4
      %s2080 = int_to_ptr.vmem [resolvable:$true] %s2079
      %2085 = dma.vmem_to_hbm [thread:$0]  %s2080, 64, %s12, [#allocation18], 32, 32, 2
    $region77: #{tpu_custom_call.1} parent=1 // pred_fallthru
      _
    // Predicated region
    $region78: #{tpu_custom_call.1} parent=1 // pred_check
      _
    $region79: #{tpu_custom_call.1} parent=1 // pred_check_branch
      %2087 = sbr.rel (0) target = $region81
    $region80: #{tpu_custom_call.1} parent=1 // pred_region
      %2088 = dma.done [#allocation4], 512
    $region81: #{tpu_custom_call.1} parent=1 // pred_fallthru
      _
    // Predicated region
    $region82: #{tpu_custom_call.1} parent=1 // pred_check
      _
    $region83: #{tpu_custom_call.1} parent=1 // pred_check_branch
      %2090 = sbr.rel (0) target = $region85
    $region84: #{tpu_custom_call.1} parent=1 // pred_region
      %2091 = dma.done [#allocation15], 64
    $region85: #{tpu_custom_call.1} parent=1 // pred_fallthru
      _
    // Predicated region
    $region86: #{tpu_custom_call.1} parent=1 // pred_check
      _
    $region87: #{tpu_custom_call.1} parent=1 // pred_check_branch
      %2093 = sbr.rel (0) target = $region89
    $region88: #{tpu_custom_call.1} parent=1 // pred_region
      %2094 = dma.done [#allocation15], 64
    $region89: #{tpu_custom_call.1} parent=1 // pred_fallthru
      _
    // Predicated region
    $region90: #{tpu_custom_call.1} parent=1 // pred_check
      _
    $region91: #{tpu_custom_call.1} parent=1 // pred_check_branch
      %2096 = sbr.rel (0) target = $region93
    $region92: #{tpu_custom_call.1} parent=1 // pred_region
      %2097 = dma.done [#allocation18], 64
    $region93: #{tpu_custom_call.1} parent=1 // pred_fallthru
      _
    %2098 = vsyncpa [#allocation3], 1
    %2099 = vsyncpa [#allocation8], 1
    %2100 = vsyncpa [#allocation11], 1
    %2101 = vsyncpa [#allocation4], 1
    %2102 = vsyncpa [#allocation15], 1
    %2103 = vsyncpa [#allocation18], 1
    %2104 = vsyncpa [#allocation5], 1

</llo_original>
